<compile_context>
chip_gen: v7x
topology: tpu7x:2x2x1
jax: 0.10.0
libtpu: 0.0.40
codegen_flags: <defaults>
</compile_context>

<pallas_src>
import jax
import jax.numpy as jnp
from jax.experimental import pallas as pl
from jax.experimental.pallas import tpu as pltpu

# ---- fixed hyperparameters implied by BagPooling.__init__ ----
IN_DIM = 256      # HopfieldPooling input_size
OUT_DIM = 256     # final output dim
L = 128           # HopfieldPooling output_size & fc hidden
NUM_HEADS = 4
HEAD_DIM = 32     # hidden_size -> per-head association-space dim
ASSOC = NUM_HEADS * HEAD_DIM   # 128
SCALING = 0.25    # explicitly set in the module (not 1/sqrt(head_dim))
UPDATE_STEPS = 3  # update_steps_max
LN_EPS = 1e-5


def _layernorm(x, w, b):
    mu = jnp.mean(x, axis=-1, keepdims=True)
    var = jnp.mean(jnp.square(x - mu), axis=-1, keepdims=True)
    return (x - mu) * jax.lax.rsqrt(var + LN_EPS) * w + b


# ------------------------------------------------------------------ kernel ----
def bag_pooling_kernel(
    embeds_ref,            # (TB, N, 256) f32 input block
    q_ref,                 # (1, 128)   precomputed projected state pattern
    hsum_ref,              # (128, 4)   SCALING * per-head lane-selector
    hbro_ref,              # (4, 128)   per-head broadcast matrix
    wkv_ref, bkv_ref,      # (256, 256), (1, 256)  fused (LN-folded) K|V projection
    w1_ref, b1_ref,        # (128, 128), (1, 128)  fused (wo @ fc0)
    w2_ref, b2_ref,        # (128, 256), (1, 256)  fc[2]
    out_ref,               # (TB, 256)
):
    x = embeds_ref[...]                                   # (TB, N, D)
    TB, N, D = x.shape

    # --- single LayerNorm statistics pass (affines folded into wkv/bkv) ---
    mu = jnp.mean(x, axis=-1, keepdims=True)
    xc = x - mu
    var = jnp.mean(xc * xc, axis=-1, keepdims=True)
    xn = (xc * jax.lax.rsqrt(var + LN_EPS)).reshape(TB * N, D)

    # --- fused K|V projection: one 256-wide MXU matmul ---
    kv = jnp.dot(xn, wkv_ref[...], preferred_element_type=jnp.float32) + bkv_ref[...]
    k3 = kv[:, :ASSOC].reshape(TB, N, ASSOC)              # (TB, N, 128)  lane-aligned split
    v3 = kv[:, ASSOC:].reshape(TB, N, ASSOC)              # (TB, N, 128)

    hsum = hsum_ref[...]                                  # (128, 4)
    hbro = hbro_ref[...]                                  # (4, 128)
    xi = q_ref[...].reshape(1, 1, ASSOC)                  # state pattern, shared over bags

    def assoc_weights(xi_cur):
        # per-head scores via dense multiply + selector matmul (keeps VPU full-lane)
        p = (k3 * xi_cur).reshape(TB * N, ASSOC)
        s = jnp.dot(p, hsum, preferred_element_type=jnp.float32).reshape(TB, N, NUM_HEADS)
        m = jnp.max(s, axis=1, keepdims=True)             # softmax over stored patterns (N)
        e = jnp.exp(s - m)
        denom = jnp.sum(e, axis=1, keepdims=True)
        a = e * pl.reciprocal(denom, approx=True)         # (TB, N, H)
        # broadcast head weights back to the packed 128-lane axis
        return jnp.dot(a.reshape(TB * N, NUM_HEADS), hbro,
                       preferred_element_type=jnp.float32).reshape(TB, N, ASSOC)

    a_full = assoc_weights(xi)
    for _ in range(UPDATE_STEPS):                         # fixed Hopfield update count
        xi = jnp.sum(a_full * k3, axis=1, keepdims=True)  # xi <- A K   (TB, 1, 128)
        a_full = assoc_weights(xi)

    assoc_out = jnp.sum(a_full * v3, axis=1)              # A V -> (TB, 128), heads already packed

    # fused (Hopfield out-projection @ fc[0]) -> ReLU -> fc[2]
    h1 = jnp.maximum(
        jnp.dot(assoc_out, w1_ref[...], preferred_element_type=jnp.float32) + b1_ref[...], 0.0)
    out_ref[...] = jnp.dot(h1, w2_ref[...], preferred_element_type=jnp.float32) + b2_ref[...]


# ------------------------------------------------------- wrapper / param prep ----
def fuse_params(params):
    """Wrapper-side algebraic fusions (fp-reassociation only)."""
    f32 = jnp.float32
    # fold LN affines into K/V projections, concatenate -> one (256,256) weight
    wk = params["ln_k_w"].reshape(-1, 1) * params["wk"]
    bk = params["ln_k_b"] @ params["wk"] + params["bk"]
    wv = params["ln_v_w"].reshape(-1, 1) * params["wv"]
    bv = params["ln_v_b"] @ params["wv"] + params["bv"]
    wkv = jnp.concatenate([wk, wv], axis=1)               # (256, 256)
    bkv = jnp.concatenate([bk, bv], axis=1)               # (1, 256)
    # state pattern is input-independent: precompute projected query
    q_src = _layernorm(params["pool_w"], params["ln_q_w"], params["ln_q_b"])
    q = q_src @ params["wq"] + params["bq"]               # (1, 128)
    # fuse Hopfield output projection into fc[0] (no nonlinearity between them)
    w1 = params["wo"] @ params["w1"]                      # (128, 128)
    b1 = params["bo"] @ params["w1"] + params["b1"]       # (1, 128)
    # constant head-selector / head-broadcast matrices
    head_ids = jnp.arange(ASSOC) // HEAD_DIM
    sel = (head_ids[:, None] == jnp.arange(NUM_HEADS)[None, :]).astype(f32)  # (128, 4)
    return dict(q=q, hsum=SCALING * sel, hbro=sel.T, wkv=wkv, bkv=bkv,
                w1=w1, b1=b1, w2=params["w2"], b2=params["b2"])


def bag_pooling_forward(embeds, params, *, block_b=512):
    """embeds: (B, N, 256) f32 -> (B, 256) f32."""
    B, N, D = embeds.shape
    assert D == IN_DIM
    fp = fuse_params(params)

    # bag-dimension tiling (pad B to a multiple of the block if needed)
    tb = min(block_b, B)
    if tb < B and tb % 8 != 0:
        tb = max(8, (tb // 8) * 8)
    n_blocks = -(-B // tb)
    B_pad = n_blocks * tb
    x = embeds if B_pad == B else jnp.pad(embeds, ((0, B_pad - B), (0, 0), (0, 0)))

    weights = (fp["q"], fp["hsum"], fp["hbro"], fp["wkv"], fp["bkv"],
               fp["w1"], fp["b1"], fp["w2"], fp["b2"])

    def resident(a):
        nd = a.ndim
        return pl.BlockSpec(a.shape, lambda *_: (0,) * nd)   # stays in VMEM across steps

    flops = B_pad * (2 * N * IN_DIM * (2 * ASSOC)            # fused K|V matmul
                     + 2 * L * L + 2 * L * OUT_DIM            # epilogue matmuls
                     + (UPDATE_STEPS + 1) * 4 * N * ASSOC * NUM_HEADS)
    transcendentals = B_pad * N * (1 + (UPDATE_STEPS + 1) * NUM_HEADS)
    bytes_accessed = (B_pad * (N * IN_DIM + OUT_DIM) * 4
                      + sum(int(w.size) * 4 for w in weights))

    out = pl.pallas_call(
        bag_pooling_kernel,
        out_shape=jax.ShapeDtypeStruct((B_pad, OUT_DIM), jnp.float32),
        grid_spec=pltpu.PrefetchScalarGridSpec(
            num_scalar_prefetch=0,
            grid=(n_blocks,),
            in_specs=[pl.BlockSpec((tb, N, D), lambda i: (i, 0, 0))]
                     + [resident(a) for a in weights],
            out_specs=pl.BlockSpec((tb, OUT_DIM), lambda i: (i, 0)),
        ),
        compiler_params=pltpu.CompilerParams(
            dimension_semantics=("parallel",),
            vmem_limit_bytes=48 * 1024 * 1024,
        ),
        cost_estimate=pl.CostEstimate(
            flops=int(flops),
            transcendentals=int(transcendentals),
            bytes_accessed=int(bytes_accessed),
        ),
    )(x, *weights)
    return out if B_pad == B else out[:B]


# ----------------------------------------------------- reference & test setup ----
def reference_forward(embeds, params):
    """Pure-JAX reference of the original (unfused) math."""
    B, N, _ = embeds.shape
    k_src = _layernorm(embeds, params["ln_k_w"], params["ln_k_b"])
    v_src = _layernorm(embeds, params["ln_v_w"], params["ln_v_b"])
    q_src = _layernorm(params["pool_w"], params["ln_q_w"], params["ln_q_b"])
    k = k_src @ params["wk"] + params["bk"]
    v = v_src @ params["wv"] + params["bv"]
    q = q_src @ params["wq"] + params["bq"]
    k4 = k.reshape(B, N, NUM_HEADS, HEAD_DIM)
    v4 = v.reshape(B, N, NUM_HEADS, HEAD_DIM)
    xi = q.reshape(1, 1, NUM_HEADS, HEAD_DIM)

    def assoc(xi_cur):
        s = SCALING * jnp.sum(k4 * xi_cur, axis=-1)        # (B, N, H)
        return jax.nn.softmax(s, axis=1)

    a = assoc(xi)
    for _ in range(UPDATE_STEPS):
        xi = jnp.sum(a[..., None] * k4, axis=1, keepdims=True)
        a = assoc(xi)
    assoc_out = jnp.sum(a[..., None] * v4, axis=1).reshape(B, ASSOC)
    h = assoc_out @ params["wo"] + params["bo"]
    h1 = jnp.maximum(h @ params["w1"] + params["b1"], 0.0)
    return h1 @ params["w2"] + params["b2"]


def init_params(key):
    """Deterministic synthetic parameters (PyTorch (out,in) weights pre-transposed to (in,out))."""
    ks = jax.random.split(key, 10)
    std = 0.05
    f32 = jnp.float32

    def w(k, out_dim, in_dim):
        return (std * jax.random.normal(k, (out_dim, in_dim), dtype=f32)).T

    return dict(
        pool_w=std * jax.random.normal(ks[0], (1, IN_DIM), dtype=f32),
        ln_k_w=jnp.ones((1, IN_DIM), f32), ln_k_b=jnp.zeros((1, IN_DIM), f32),
        ln_q_w=jnp.ones((1, IN_DIM), f32), ln_q_b=jnp.zeros((1, IN_DIM), f32),
        ln_v_w=jnp.ones((1, IN_DIM), f32), ln_v_b=jnp.zeros((1, IN_DIM), f32),
        wq=w(ks[1], ASSOC, IN_DIM), bq=jnp.zeros((1, ASSOC), f32),
        wk=w(ks[2], ASSOC, IN_DIM), bk=jnp.zeros((1, ASSOC), f32),
        wv=w(ks[3], ASSOC, IN_DIM), bv=jnp.zeros((1, ASSOC), f32),
        wo=w(ks[4], L, ASSOC),      bo=jnp.zeros((1, L), f32),
        w1=w(ks[5], 128, L),        b1=0.01 * jnp.ones((1, 128), f32),
        w2=w(ks[6], OUT_DIM, 128),  b2=0.01 * jnp.ones((1, OUT_DIM), f32),
    )


if __name__ == "__main__":
    key = jax.random.PRNGKey(0)
    k_x, k_p = jax.random.split(key)

    B, N = 2, 8                       # 2 bags of 8 instance embeddings, each 256-d
    embeds = jax.random.normal(k_x, (B, N, IN_DIM), dtype=jnp.float32)
    params = init_params(k_p)

    y = jax.block_until_ready(bag_pooling_forward(embeds, params))
    y_ref = jax.block_until_ready(reference_forward(embeds, params))

    assert y.shape == (B, OUT_DIM), y.shape
    assert jnp.all(jnp.isfinite(y)), "non-finite output"
    assert jnp.allclose(y, y_ref, atol=5e-3, rtol=5e-2), float(jnp.max(jnp.abs(y - y_ref)))
    print("KERNEL_OK")
</pallas_src>

<mosaic_0001>
module attributes {stable_mosaic.version = 11 : i64} {
  func.func @bag_pooling_kernel(%arg0: i32, %arg1: memref<2x8x256xf32, #tpu.memory_space<vmem>>, %arg2: memref<1x128xf32, #tpu.memory_space<vmem>>, %arg3: memref<128x4xf32, #tpu.memory_space<vmem>>, %arg4: memref<4x128xf32, #tpu.memory_space<vmem>>, %arg5: memref<256x256xf32, #tpu.memory_space<vmem>>, %arg6: memref<1x256xf32, #tpu.memory_space<vmem>>, %arg7: memref<128x128xf32, #tpu.memory_space<vmem>>, %arg8: memref<1x128xf32, #tpu.memory_space<vmem>>, %arg9: memref<128x256xf32, #tpu.memory_space<vmem>>, %arg10: memref<1x256xf32, #tpu.memory_space<vmem>>, %arg11: memref<2x256xf32, #tpu.memory_space<vmem>>) attributes {dimension_semantics = [#tpu.dimension_semantics<parallel>], iteration_bounds = array<i64: 1>, scalar_prefetch = 0 : i64, scratch_operands = 0 : i64, tpu.core_type = #tpu.core_type<tc>, window_params = [{transform_indices = @transform_0, window_bounds = array<i64: 2, 8, 256>}, {pipeline_mode = #tpu.pipeline_mode<synchronous>, transform_indices = @transform_1, window_bounds = array<i64: 1, 128>}, {pipeline_mode = #tpu.pipeline_mode<synchronous>, transform_indices = @transform_2, window_bounds = array<i64: 128, 4>}, {pipeline_mode = #tpu.pipeline_mode<synchronous>, transform_indices = @transform_3, window_bounds = array<i64: 4, 128>}, {pipeline_mode = #tpu.pipeline_mode<synchronous>, transform_indices = @transform_4, window_bounds = array<i64: 256, 256>}, {pipeline_mode = #tpu.pipeline_mode<synchronous>, transform_indices = @transform_5, window_bounds = array<i64: 1, 256>}, {pipeline_mode = #tpu.pipeline_mode<synchronous>, transform_indices = @transform_6, window_bounds = array<i64: 128, 128>}, {pipeline_mode = #tpu.pipeline_mode<synchronous>, transform_indices = @transform_7, window_bounds = array<i64: 1, 128>}, {pipeline_mode = #tpu.pipeline_mode<synchronous>, transform_indices = @transform_8, window_bounds = array<i64: 128, 256>}, {pipeline_mode = #tpu.pipeline_mode<synchronous>, transform_indices = @transform_9, window_bounds = array<i64: 1, 256>}, {transform_indices = @transform_10, window_bounds = array<i64: 2, 256>}]} {
    %c0 = arith.constant 0 : index
    %c0_0 = arith.constant 0 : index
    %c0_1 = arith.constant 0 : index
    %0 = vector.load %arg1[%c0, %c0_0, %c0_1] : memref<2x8x256xf32, #tpu.memory_space<vmem>>, vector<2x8x256xf32>
    %cst = arith.constant dense<0.000000e+00> : vector<2x8xf32>
    %1 = vector.multi_reduction <add>, %0, %cst [2] : vector<2x8x256xf32> to vector<2x8xf32>
    %2 = vector.shape_cast %1 : vector<2x8xf32> to vector<2x8x1xf32>
    %cst_2 = arith.constant 2.560000e+02 : f32
    %3 = vector.broadcast %cst_2 : f32 to vector<2x8x1xf32>
    %4 = arith.divf %2, %3 : vector<2x8x1xf32>
    %5 = vector.broadcast %4 : vector<2x8x1xf32> to vector<2x8x256xf32>
    %6 = arith.subf %0, %5 : vector<2x8x256xf32>
    %7 = arith.mulf %6, %6 : vector<2x8x256xf32>
    %cst_3 = arith.constant dense<0.000000e+00> : vector<2x8xf32>
    %8 = vector.multi_reduction <add>, %7, %cst_3 [2] : vector<2x8x256xf32> to vector<2x8xf32>
    %9 = vector.shape_cast %8 : vector<2x8xf32> to vector<2x8x1xf32>
    %cst_4 = arith.constant 2.560000e+02 : f32
    %10 = vector.broadcast %cst_4 : f32 to vector<2x8x1xf32>
    %11 = arith.divf %9, %10 : vector<2x8x1xf32>
    %cst_5 = arith.constant 9.99999974E-6 : f32
    %12 = vector.broadcast %cst_5 : f32 to vector<2x8x1xf32>
    %13 = arith.addf %11, %12 : vector<2x8x1xf32>
    %14 = math.rsqrt %13 : vector<2x8x1xf32>
    %15 = vector.broadcast %14 : vector<2x8x1xf32> to vector<2x8x256xf32>
    %16 = arith.mulf %6, %15 : vector<2x8x256xf32>
    %17 = vector.shape_cast %16 : vector<2x8x256xf32> to vector<16x256xf32>
    %c0_6 = arith.constant 0 : index
    %c0_7 = arith.constant 0 : index
    %18 = vector.load %arg5[%c0_6, %c0_7] : memref<256x256xf32, #tpu.memory_space<vmem>>, vector<256x256xf32>
    %cst_8 = arith.constant dense<0.000000e+00> : vector<16x256xf32>
    %19 = tpu.matmul %17, %18, %cst_8 {dimension_numbers = #tpu.dot_dimension_numbers<[1], [0], [0], [1], [0, 0, 1, 1], [], []>} : vector<16x256xf32>, vector<256x256xf32>, vector<16x256xf32> -> vector<16x256xf32>
    %c0_9 = arith.constant 0 : index
    %c0_10 = arith.constant 0 : index
    %20 = vector.load %arg6[%c0_9, %c0_10] : memref<1x256xf32, #tpu.memory_space<vmem>>, vector<1x256xf32>
    %21 = vector.broadcast %20 : vector<1x256xf32> to vector<16x256xf32>
    %22 = arith.addf %19, %21 : vector<16x256xf32>
    %23 = vector.extract_strided_slice %22 {offsets = [0, 0], sizes = [16, 128], strides = [1, 1]} : vector<16x256xf32> to vector<16x128xf32>
    %24 = vector.shape_cast %23 : vector<16x128xf32> to vector<2x8x128xf32>
    %25 = vector.extract_strided_slice %22 {offsets = [0, 128], sizes = [16, 128], strides = [1, 1]} : vector<16x256xf32> to vector<16x128xf32>
    %26 = vector.shape_cast %25 : vector<16x128xf32> to vector<2x8x128xf32>
    %c0_11 = arith.constant 0 : index
    %c0_12 = arith.constant 0 : index
    %27 = vector.load %arg3[%c0_11, %c0_12] : memref<128x4xf32, #tpu.memory_space<vmem>>, vector<128x4xf32>
    %c0_13 = arith.constant 0 : index
    %c0_14 = arith.constant 0 : index
    %28 = vector.load %arg4[%c0_13, %c0_14] : memref<4x128xf32, #tpu.memory_space<vmem>>, vector<4x128xf32>
    %c0_15 = arith.constant 0 : index
    %c0_16 = arith.constant 0 : index
    %29 = vector.load %arg2[%c0_15, %c0_16] : memref<1x128xf32, #tpu.memory_space<vmem>>, vector<1x128xf32>
    %30 = vector.shape_cast %29 : vector<1x128xf32> to vector<1x1x128xf32>
    %31 = vector.broadcast %30 : vector<1x1x128xf32> to vector<2x8x128xf32>
    %32 = arith.mulf %24, %31 : vector<2x8x128xf32>
    %33 = vector.shape_cast %32 : vector<2x8x128xf32> to vector<16x128xf32>
    %cst_17 = arith.constant dense<0.000000e+00> : vector<16x4xf32>
    %34 = tpu.matmul %33, %27, %cst_17 {dimension_numbers = #tpu.dot_dimension_numbers<[1], [0], [0], [1], [0, 0, 1, 1], [], []>} : vector<16x128xf32>, vector<128x4xf32>, vector<16x4xf32> -> vector<16x4xf32>
    %35 = vector.shape_cast %34 : vector<16x4xf32> to vector<2x8x4xf32>
    %cst_18 = arith.constant dense<0xFF800000> : vector<2x4xf32>
    %36 = vector.multi_reduction <maximumf>, %35, %cst_18 [1] : vector<2x8x4xf32> to vector<2x4xf32>
    %37 = vector.shape_cast %36 : vector<2x4xf32> to vector<2x1x4xf32>
    %38 = vector.broadcast %37 : vector<2x1x4xf32> to vector<2x8x4xf32>
    %39 = arith.subf %35, %38 : vector<2x8x4xf32>
    %40 = math.exp %39 : vector<2x8x4xf32>
    %cst_19 = arith.constant dense<0.000000e+00> : vector<2x4xf32>
    %41 = vector.multi_reduction <add>, %40, %cst_19 [1] : vector<2x8x4xf32> to vector<2x4xf32>
    %42 = vector.shape_cast %41 : vector<2x4xf32> to vector<2x1x4xf32>
    %43 = tpu.reciprocal %42 {approx = true} : vector<2x1x4xf32> -> vector<2x1x4xf32>
    %44 = vector.broadcast %43 : vector<2x1x4xf32> to vector<2x8x4xf32>
    %45 = arith.mulf %40, %44 : vector<2x8x4xf32>
    %46 = vector.shape_cast %45 : vector<2x8x4xf32> to vector<16x4xf32>
    %cst_20 = arith.constant dense<0.000000e+00> : vector<16x128xf32>
    %47 = tpu.matmul %46, %28, %cst_20 {dimension_numbers = #tpu.dot_dimension_numbers<[1], [0], [0], [1], [0, 0, 1, 1], [], []>} : vector<16x4xf32>, vector<4x128xf32>, vector<16x128xf32> -> vector<16x128xf32>
    %48 = vector.shape_cast %47 : vector<16x128xf32> to vector<2x8x128xf32>
    %49 = arith.mulf %48, %24 : vector<2x8x128xf32>
    %cst_21 = arith.constant dense<0.000000e+00> : vector<2x128xf32>
    %50 = vector.multi_reduction <add>, %49, %cst_21 [1] : vector<2x8x128xf32> to vector<2x128xf32>
    %51 = vector.shape_cast %50 : vector<2x128xf32> to vector<2x1x128xf32>
    %52 = vector.broadcast %51 : vector<2x1x128xf32> to vector<2x8x128xf32>
    %53 = arith.mulf %24, %52 : vector<2x8x128xf32>
    %54 = vector.shape_cast %53 : vector<2x8x128xf32> to vector<16x128xf32>
    %cst_22 = arith.constant dense<0.000000e+00> : vector<16x4xf32>
    %55 = tpu.matmul %54, %27, %cst_22 {dimension_numbers = #tpu.dot_dimension_numbers<[1], [0], [0], [1], [0, 0, 1, 1], [], []>} : vector<16x128xf32>, vector<128x4xf32>, vector<16x4xf32> -> vector<16x4xf32>
    %56 = vector.shape_cast %55 : vector<16x4xf32> to vector<2x8x4xf32>
    %cst_23 = arith.constant dense<0xFF800000> : vector<2x4xf32>
    %57 = vector.multi_reduction <maximumf>, %56, %cst_23 [1] : vector<2x8x4xf32> to vector<2x4xf32>
    %58 = vector.shape_cast %57 : vector<2x4xf32> to vector<2x1x4xf32>
    %59 = vector.broadcast %58 : vector<2x1x4xf32> to vector<2x8x4xf32>
    %60 = arith.subf %56, %59 : vector<2x8x4xf32>
    %61 = math.exp %60 : vector<2x8x4xf32>
    %cst_24 = arith.constant dense<0.000000e+00> : vector<2x4xf32>
    %62 = vector.multi_reduction <add>, %61, %cst_24 [1] : vector<2x8x4xf32> to vector<2x4xf32>
    %63 = vector.shape_cast %62 : vector<2x4xf32> to vector<2x1x4xf32>
    %64 = tpu.reciprocal %63 {approx = true} : vector<2x1x4xf32> -> vector<2x1x4xf32>
    %65 = vector.broadcast %64 : vector<2x1x4xf32> to vector<2x8x4xf32>
    %66 = arith.mulf %61, %65 : vector<2x8x4xf32>
    %67 = vector.shape_cast %66 : vector<2x8x4xf32> to vector<16x4xf32>
    %cst_25 = arith.constant dense<0.000000e+00> : vector<16x128xf32>
    %68 = tpu.matmul %67, %28, %cst_25 {dimension_numbers = #tpu.dot_dimension_numbers<[1], [0], [0], [1], [0, 0, 1, 1], [], []>} : vector<16x4xf32>, vector<4x128xf32>, vector<16x128xf32> -> vector<16x128xf32>
    %69 = vector.shape_cast %68 : vector<16x128xf32> to vector<2x8x128xf32>
    %70 = arith.mulf %69, %24 : vector<2x8x128xf32>
    %cst_26 = arith.constant dense<0.000000e+00> : vector<2x128xf32>
    %71 = vector.multi_reduction <add>, %70, %cst_26 [1] : vector<2x8x128xf32> to vector<2x128xf32>
    %72 = vector.shape_cast %71 : vector<2x128xf32> to vector<2x1x128xf32>
    %73 = vector.broadcast %72 : vector<2x1x128xf32> to vector<2x8x128xf32>
    %74 = arith.mulf %24, %73 : vector<2x8x128xf32>
    %75 = vector.shape_cast %74 : vector<2x8x128xf32> to vector<16x128xf32>
    %cst_27 = arith.constant dense<0.000000e+00> : vector<16x4xf32>
    %76 = tpu.matmul %75, %27, %cst_27 {dimension_numbers = #tpu.dot_dimension_numbers<[1], [0], [0], [1], [0, 0, 1, 1], [], []>} : vector<16x128xf32>, vector<128x4xf32>, vector<16x4xf32> -> vector<16x4xf32>
    %77 = vector.shape_cast %76 : vector<16x4xf32> to vector<2x8x4xf32>
    %cst_28 = arith.constant dense<0xFF800000> : vector<2x4xf32>
    %78 = vector.multi_reduction <maximumf>, %77, %cst_28 [1] : vector<2x8x4xf32> to vector<2x4xf32>
    %79 = vector.shape_cast %78 : vector<2x4xf32> to vector<2x1x4xf32>
    %80 = vector.broadcast %79 : vector<2x1x4xf32> to vector<2x8x4xf32>
    %81 = arith.subf %77, %80 : vector<2x8x4xf32>
    %82 = math.exp %81 : vector<2x8x4xf32>
    %cst_29 = arith.constant dense<0.000000e+00> : vector<2x4xf32>
    %83 = vector.multi_reduction <add>, %82, %cst_29 [1] : vector<2x8x4xf32> to vector<2x4xf32>
    %84 = vector.shape_cast %83 : vector<2x4xf32> to vector<2x1x4xf32>
    %85 = tpu.reciprocal %84 {approx = true} : vector<2x1x4xf32> -> vector<2x1x4xf32>
    %86 = vector.broadcast %85 : vector<2x1x4xf32> to vector<2x8x4xf32>
    %87 = arith.mulf %82, %86 : vector<2x8x4xf32>
    %88 = vector.shape_cast %87 : vector<2x8x4xf32> to vector<16x4xf32>
    %cst_30 = arith.constant dense<0.000000e+00> : vector<16x128xf32>
    %89 = tpu.matmul %88, %28, %cst_30 {dimension_numbers = #tpu.dot_dimension_numbers<[1], [0], [0], [1], [0, 0, 1, 1], [], []>} : vector<16x4xf32>, vector<4x128xf32>, vector<16x128xf32> -> vector<16x128xf32>
    %90 = vector.shape_cast %89 : vector<16x128xf32> to vector<2x8x128xf32>
    %91 = arith.mulf %90, %24 : vector<2x8x128xf32>
    %cst_31 = arith.constant dense<0.000000e+00> : vector<2x128xf32>
    %92 = vector.multi_reduction <add>, %91, %cst_31 [1] : vector<2x8x128xf32> to vector<2x128xf32>
    %93 = vector.shape_cast %92 : vector<2x128xf32> to vector<2x1x128xf32>
    %94 = vector.broadcast %93 : vector<2x1x128xf32> to vector<2x8x128xf32>
    %95 = arith.mulf %24, %94 : vector<2x8x128xf32>
    %96 = vector.shape_cast %95 : vector<2x8x128xf32> to vector<16x128xf32>
    %cst_32 = arith.constant dense<0.000000e+00> : vector<16x4xf32>
    %97 = tpu.matmul %96, %27, %cst_32 {dimension_numbers = #tpu.dot_dimension_numbers<[1], [0], [0], [1], [0, 0, 1, 1], [], []>} : vector<16x128xf32>, vector<128x4xf32>, vector<16x4xf32> -> vector<16x4xf32>
    %98 = vector.shape_cast %97 : vector<16x4xf32> to vector<2x8x4xf32>
    %cst_33 = arith.constant dense<0xFF800000> : vector<2x4xf32>
    %99 = vector.multi_reduction <maximumf>, %98, %cst_33 [1] : vector<2x8x4xf32> to vector<2x4xf32>
    %100 = vector.shape_cast %99 : vector<2x4xf32> to vector<2x1x4xf32>
    %101 = vector.broadcast %100 : vector<2x1x4xf32> to vector<2x8x4xf32>
    %102 = arith.subf %98, %101 : vector<2x8x4xf32>
    %103 = math.exp %102 : vector<2x8x4xf32>
    %cst_34 = arith.constant dense<0.000000e+00> : vector<2x4xf32>
    %104 = vector.multi_reduction <add>, %103, %cst_34 [1] : vector<2x8x4xf32> to vector<2x4xf32>
    %105 = vector.shape_cast %104 : vector<2x4xf32> to vector<2x1x4xf32>
    %106 = tpu.reciprocal %105 {approx = true} : vector<2x1x4xf32> -> vector<2x1x4xf32>
    %107 = vector.broadcast %106 : vector<2x1x4xf32> to vector<2x8x4xf32>
    %108 = arith.mulf %103, %107 : vector<2x8x4xf32>
    %109 = vector.shape_cast %108 : vector<2x8x4xf32> to vector<16x4xf32>
    %cst_35 = arith.constant dense<0.000000e+00> : vector<16x128xf32>
    %110 = tpu.matmul %109, %28, %cst_35 {dimension_numbers = #tpu.dot_dimension_numbers<[1], [0], [0], [1], [0, 0, 1, 1], [], []>} : vector<16x4xf32>, vector<4x128xf32>, vector<16x128xf32> -> vector<16x128xf32>
    %111 = vector.shape_cast %110 : vector<16x128xf32> to vector<2x8x128xf32>
    %112 = arith.mulf %111, %26 : vector<2x8x128xf32>
    %cst_36 = arith.constant dense<0.000000e+00> : vector<2x128xf32>
    %113 = vector.multi_reduction <add>, %112, %cst_36 [1] : vector<2x8x128xf32> to vector<2x128xf32>
    %c0_37 = arith.constant 0 : index
    %c0_38 = arith.constant 0 : index
    %114 = vector.load %arg7[%c0_37, %c0_38] : memref<128x128xf32, #tpu.memory_space<vmem>>, vector<128x128xf32>
    %cst_39 = arith.constant dense<0.000000e+00> : vector<2x128xf32>
    %115 = tpu.matmul %113, %114, %cst_39 {dimension_numbers = #tpu.dot_dimension_numbers<[1], [0], [0], [1], [0, 0, 1, 1], [], []>} : vector<2x128xf32>, vector<128x128xf32>, vector<2x128xf32> -> vector<2x128xf32>
    %c0_40 = arith.constant 0 : index
    %c0_41 = arith.constant 0 : index
    %116 = vector.load %arg8[%c0_40, %c0_41] : memref<1x128xf32, #tpu.memory_space<vmem>>, vector<1x128xf32>
    %117 = vector.broadcast %116 : vector<1x128xf32> to vector<2x128xf32>
    %118 = arith.addf %115, %117 : vector<2x128xf32>
    %cst_42 = arith.constant 0.000000e+00 : f32
    %119 = vector.broadcast %cst_42 : f32 to vector<2x128xf32>
    %120 = arith.maximumf %118, %119 : vector<2x128xf32>
    %c0_43 = arith.constant 0 : index
    %c0_44 = arith.constant 0 : index
    %121 = vector.load %arg9[%c0_43, %c0_44] : memref<128x256xf32, #tpu.memory_space<vmem>>, vector<128x256xf32>
    %cst_45 = arith.constant dense<0.000000e+00> : vector<2x256xf32>
    %122 = tpu.matmul %120, %121, %cst_45 {dimension_numbers = #tpu.dot_dimension_numbers<[1], [0], [0], [1], [0, 0, 1, 1], [], []>} : vector<2x128xf32>, vector<128x256xf32>, vector<2x256xf32> -> vector<2x256xf32>
    %c0_46 = arith.constant 0 : index
    %c0_47 = arith.constant 0 : index
    %123 = vector.load %arg10[%c0_46, %c0_47] : memref<1x256xf32, #tpu.memory_space<vmem>>, vector<1x256xf32>
    %124 = vector.broadcast %123 : vector<1x256xf32> to vector<2x256xf32>
    %125 = arith.addf %122, %124 : vector<2x256xf32>
    %c0_48 = arith.constant 0 : index
    %c0_49 = arith.constant 0 : index
    %126 = vector.load %arg11[%c0_48, %c0_49] : memref<2x256xf32, #tpu.memory_space<vmem>>, vector<2x256xf32>
    tpu.vector_store %arg11[%c0_48, %c0_49], %125 {strides = array<i32>} : memref<2x256xf32, #tpu.memory_space<vmem>>, vector<2x256xf32>,
    return
  }
  func.func @transform_0(%arg0: i32) -> (i32, i32, i32) {
    %c0_i32 = arith.constant 0 : i32
    %c0_i32_0 = arith.constant 0 : i32
    %c0_i32_1 = arith.constant 0 : i32
    return %arg0, %c0_i32, %c0_i32_0 : i32, i32, i32
  }
  func.func @transform_1(%arg0: i32) -> (i32, i32) {
    %c0_i32 = arith.constant 0 : i32
    %c0_i32_0 = arith.constant 0 : i32
    %c0_i32_1 = arith.constant 0 : i32
    return %c0_i32, %c0_i32_0 : i32, i32
  }
  func.func @transform_2(%arg0: i32) -> (i32, i32) {
    %c0_i32 = arith.constant 0 : i32
    %c0_i32_0 = arith.constant 0 : i32
    %c0_i32_1 = arith.constant 0 : i32
    return %c0_i32, %c0_i32_0 : i32, i32
  }
  func.func @transform_3(%arg0: i32) -> (i32, i32) {
    %c0_i32 = arith.constant 0 : i32
    %c0_i32_0 = arith.constant 0 : i32
    %c0_i32_1 = arith.constant 0 : i32
    return %c0_i32, %c0_i32_0 : i32, i32
  }
  func.func @transform_4(%arg0: i32) -> (i32, i32) {
    %c0_i32 = arith.constant 0 : i32
    %c0_i32_0 = arith.constant 0 : i32
    %c0_i32_1 = arith.constant 0 : i32
    return %c0_i32, %c0_i32_0 : i32, i32
  }
  func.func @transform_5(%arg0: i32) -> (i32, i32) {
    %c0_i32 = arith.constant 0 : i32
    %c0_i32_0 = arith.constant 0 : i32
    %c0_i32_1 = arith.constant 0 : i32
    return %c0_i32, %c0_i32_0 : i32, i32
  }
  func.func @transform_6(%arg0: i32) -> (i32, i32) {
    %c0_i32 = arith.constant 0 : i32
    %c0_i32_0 = arith.constant 0 : i32
    %c0_i32_1 = arith.constant 0 : i32
    return %c0_i32, %c0_i32_0 : i32, i32
  }
  func.func @transform_7(%arg0: i32) -> (i32, i32) {
    %c0_i32 = arith.constant 0 : i32
    %c0_i32_0 = arith.constant 0 : i32
    %c0_i32_1 = arith.constant 0 : i32
    return %c0_i32, %c0_i32_0 : i32, i32
  }
  func.func @transform_8(%arg0: i32) -> (i32, i32) {
    %c0_i32 = arith.constant 0 : i32
    %c0_i32_0 = arith.constant 0 : i32
    %c0_i32_1 = arith.constant 0 : i32
    return %c0_i32, %c0_i32_0 : i32, i32
  }
  func.func @transform_9(%arg0: i32) -> (i32, i32) {
    %c0_i32 = arith.constant 0 : i32
    %c0_i32_0 = arith.constant 0 : i32
    %c0_i32_1 = arith.constant 0 : i32
    return %c0_i32, %c0_i32_0 : i32, i32
  }
  func.func @transform_10(%arg0: i32) -> (i32, i32) {
    %c0_i32 = arith.constant 0 : i32
    %c0_i32_0 = arith.constant 0 : i32
    return %arg0, %c0_i32 : i32, i32
  }
}

</mosaic_0001>

<llo_original>
// kernel: tpu_custom_call.1
$region0: #{tpu_custom_call.1}
  #allocation0 [shape = 'u32[]', space=smem, size = 0x4, offset = 0x4, fixed_abs, tag = 'smem constant byte address 0x4 - core index']
  #allocation1 [shape = 'u32[144,128]{1,0:T(1,128)}', space=vmem, size = 0x12000, scoped, tag = 'internal scratch']
  %s0 = inlined_call_operand.hbm [shape: f32[2,8,256], index: 0, kind: input, shape index: {}]
  %s1 = inlined_call_operand.vmem [shape: f32[1,128], index: 1, kind: input, shape index: {}]
  %s2 = inlined_call_operand.vmem [shape: f32[128,4], index: 2, kind: input, shape index: {}]
  %s3 = inlined_call_operand.vmem [shape: f32[4,128], index: 3, kind: input, shape index: {}]
  %s4 = inlined_call_operand.hbm [shape: f32[256,256], index: 4, kind: input, shape index: {}]
  %s5 = inlined_call_operand.vmem [shape: f32[1,256], index: 5, kind: input, shape index: {}]
  %s6 = inlined_call_operand.vmem [shape: f32[128,128], index: 6, kind: input, shape index: {}]
  %s7 = inlined_call_operand.vmem [shape: f32[1,128], index: 7, kind: input, shape index: {}]
  %s8 = inlined_call_operand.hbm [shape: f32[128,256], index: 8, kind: input, shape index: {}]
  %s9 = inlined_call_operand.vmem [shape: f32[1,256], index: 9, kind: input, shape index: {}]
  %s10 = inlined_call_operand.hbm [shape: f32[2,256], index: 10, kind: output, shape index: {}]
  %s11 = sld [smem:[#allocation0]]
  $region62: #{tpu_custom_call.1} parent=0
    _
  %s13 = ssub.s32 1, %s11
  %s14 = scalar_select 0, %s13, %s11
  $region1: #{tpu_custom_call.1} parent=0
    #allocation2 [shape = 'u8[16384]{0}', space=vmem, size = 0x4000, scoped, tag = 'input window, operand 0, single buffered']
    #allocation3 [shape = 's32[1]{0}', space=sflag, size = 0x4, scoped, tag = 'scoped memory for tpu_custom_call.1']
    #allocation4 [shape = 's32[1]{0}', space=sflag, size = 0x4, scoped, tag = 'scoped memory for tpu_custom_call.1']
    #allocation5 [shape = 'u8[262144]{0}', space=vmem, size = 0x40000, scoped, tag = 'input window, operand 4, single buffered']
    #allocation6 [shape = 's32[1]{0}', space=sflag, size = 0x4, scoped, tag = 'scoped memory for tpu_custom_call.1']
    #allocation7 [shape = 'u8[131072]{0}', space=vmem, size = 0x20000, scoped, tag = 'input window, operand 8, single buffered']
    #allocation8 [shape = 'u8[2048]{0}', space=vmem, size = 0x800, scoped, tag = 'output window, operand 0, single buffered']
    %15 = vsyncpa [#allocation3], 0
    %16 = vsyncpa [#allocation6], 0
    %17 = vsyncpa [#allocation4], 0
    // Predicated region
    $region2: #{tpu_custom_call.1} parent=1 // pred_check
      _
    $region3: #{tpu_custom_call.1} parent=1 // pred_check_branch
      %19 = sbr.rel (0) target = $region5
    $region4: #{tpu_custom_call.1} parent=1 // pred_region
      %s21 = ssub.s32 512, 512
      %22 = vsyncadd [#allocation3], %s21
      %s23 = sshll.u32 [#allocation2], 4
      %s24 = int_to_ptr.vmem [resolvable:$true] %s23
      %29 = dma.hbm_to_vmem [thread:$0]  %s0, 512, %s24, [#allocation3], 256, 256, 16
    $region5: #{tpu_custom_call.1} parent=1 // pred_fallthru
      _
    // Predicated region
    $region6: #{tpu_custom_call.1} parent=1 // pred_check
      _
    $region7: #{tpu_custom_call.1} parent=1 // pred_check_branch
      %31 = sbr.rel (0) target = $region9
    $region8: #{tpu_custom_call.1} parent=1 // pred_region
      _
    $region9: #{tpu_custom_call.1} parent=1 // pred_fallthru
      _
    // Predicated region
    $region10: #{tpu_custom_call.1} parent=1 // pred_check
      _
    $region11: #{tpu_custom_call.1} parent=1 // pred_check_branch
      %33 = sbr.rel (0) target = $region13
    $region12: #{tpu_custom_call.1} parent=1 // pred_region
      _
    $region13: #{tpu_custom_call.1} parent=1 // pred_fallthru
      _
    // Predicated region
    $region14: #{tpu_custom_call.1} parent=1 // pred_check
      _
    $region15: #{tpu_custom_call.1} parent=1 // pred_check_branch
      %35 = sbr.rel (0) target = $region17
    $region16: #{tpu_custom_call.1} parent=1 // pred_region
      _
    $region17: #{tpu_custom_call.1} parent=1 // pred_fallthru
      _
    // Predicated region
    $region18: #{tpu_custom_call.1} parent=1 // pred_check
      _
    $region19: #{tpu_custom_call.1} parent=1 // pred_check_branch
      %37 = sbr.rel (0) target = $region21
    $region20: #{tpu_custom_call.1} parent=1 // pred_region
      %s39 = ssub.s32 8192, 8192
      %40 = vsyncadd [#allocation6], %s39
      %s41 = sshll.u32 [#allocation5], 4
      %s42 = int_to_ptr.vmem [resolvable:$true] %s41
      %47 = dma.hbm_to_vmem [thread:$0]  %s4, 8192, %s42, [#allocation6], 256, 256, 16
    $region21: #{tpu_custom_call.1} parent=1 // pred_fallthru
      _
    // Predicated region
    $region22: #{tpu_custom_call.1} parent=1 // pred_check
      _
    $region23: #{tpu_custom_call.1} parent=1 // pred_check_branch
      %49 = sbr.rel (0) target = $region25
    $region24: #{tpu_custom_call.1} parent=1 // pred_region
      _
    $region25: #{tpu_custom_call.1} parent=1 // pred_fallthru
      _
    // Predicated region
    $region26: #{tpu_custom_call.1} parent=1 // pred_check
      _
    $region27: #{tpu_custom_call.1} parent=1 // pred_check_branch
      %51 = sbr.rel (0) target = $region29
    $region28: #{tpu_custom_call.1} parent=1 // pred_region
      _
    $region29: #{tpu_custom_call.1} parent=1 // pred_fallthru
      _
    // Predicated region
    $region30: #{tpu_custom_call.1} parent=1 // pred_check
      _
    $region31: #{tpu_custom_call.1} parent=1 // pred_check_branch
      %53 = sbr.rel (0) target = $region33
    $region32: #{tpu_custom_call.1} parent=1 // pred_region
      _
    $region33: #{tpu_custom_call.1} parent=1 // pred_fallthru
      _
    // Predicated region
    $region34: #{tpu_custom_call.1} parent=1 // pred_check
      _
    $region35: #{tpu_custom_call.1} parent=1 // pred_check_branch
      %55 = sbr.rel (0) target = $region37
    $region36: #{tpu_custom_call.1} parent=1 // pred_region
      %s57 = ssub.s32 4096, 4096
      %58 = vsyncadd [#allocation6], %s57
      %s59 = sshll.u32 [#allocation7], 4
      %s60 = int_to_ptr.vmem [resolvable:$true] %s59
      %65 = dma.hbm_to_vmem [thread:$0]  %s8, 4096, %s60, [#allocation6], 256, 256, 16
    $region37: #{tpu_custom_call.1} parent=1 // pred_fallthru
      _
    // Predicated region
    $region38: #{tpu_custom_call.1} parent=1 // pred_check
      _
    $region39: #{tpu_custom_call.1} parent=1 // pred_check_branch
      %67 = sbr.rel (0) target = $region41
    $region40: #{tpu_custom_call.1} parent=1 // pred_region
      _
    $region41: #{tpu_custom_call.1} parent=1 // pred_fallthru
      _
    // Predicated region
    $region42: #{tpu_custom_call.1} parent=1 // pred_check
      _
    $region43: #{tpu_custom_call.1} parent=1 // pred_check_branch
      %69 = sbr.rel (0) target = $region45
    $region44: #{tpu_custom_call.1} parent=1 // pred_region
      %70 = dma.done [#allocation3], 512
    $region45: #{tpu_custom_call.1} parent=1 // pred_fallthru
      _
    // Predicated region
    $region46: #{tpu_custom_call.1} parent=1 // pred_check
      _
    $region47: #{tpu_custom_call.1} parent=1 // pred_check_branch
      %72 = sbr.rel (0) target = $region49
    $region48: #{tpu_custom_call.1} parent=1 // pred_region
      %73 = dma.done [#allocation6], 8192
    $region49: #{tpu_custom_call.1} parent=1 // pred_fallthru
      _
    // Predicated region
    $region50: #{tpu_custom_call.1} parent=1 // pred_check
      _
    $region51: #{tpu_custom_call.1} parent=1 // pred_check_branch
      %75 = sbr.rel (0) target = $region53
    $region52: #{tpu_custom_call.1} parent=1 // pred_region
      %76 = dma.done [#allocation6], 4096
    $region53: #{tpu_custom_call.1} parent=1 // pred_fallthru
      _
    %v77 = vld [vmem:[#allocation2] sm:$0xff]
    %v78 = vld [vmem:[#allocation2 + $0x8] sm:$0xff]
    %v79 = vld [vmem:[#allocation2 + $0x10] sm:$0xff]
    %v80 = vld [vmem:[#allocation2 + $0x18] sm:$0xff]
    %v81 = vadd.f32 %v77, %v78
    %82 = vadd.xlane.f32.xlu0 %v81
    %v83 = vpop.xlane.xlu0 %82
    %v84 = vadd.f32 %v79, %v80
    %85 = vadd.xlane.f32.xlu0 %v84
    %v86 = vpop.xlane.xlu0 %85
    %v87 = vrcp.pop 256.0
    %v88 = vmul.f32 %v83, %v87
    %v89 = vmul.f32 %v86, %v87
    %v90 = vsub.f32 %v77, %v88
    %v91 = vsub.f32 %v78, %v88
    %v92 = vsub.f32 %v79, %v89
    %v93 = vsub.f32 %v80, %v89
    %v94 = vmul.f32 %v90, %v90
    %v95 = vmul.f32 %v91, %v91
    %v96 = vmul.f32 %v92, %v92
    %v97 = vmul.f32 %v93, %v93
    %v98 = vadd.f32 %v94, %v95
    %99 = vadd.xlane.f32.xlu0 %v98
    %v100 = vpop.xlane.xlu0 %99
    %v101 = vadd.f32 %v96, %v97
    %102 = vadd.xlane.f32.xlu0 %v101
    %v103 = vpop.xlane.xlu0 %102
    %v104 = vmul.f32 %v100, %v87
    %v105 = vmul.f32 %v103, %v87
    %v106 = vadd.f32 %v104, 1e-05
    %v107 = vadd.f32 %v105, 1e-05
    %v108 = vrsqrt.pop %v106
    %v109 = vrsqrt.pop %v107
    %v110 = vmul.f32 %v90, %v108
    %v111 = vmul.f32 %v91, %v108
    %v112 = vmul.f32 %v92, %v109
    %v113 = vmul.f32 %v93, %v109
    %v114 = vld [vmem:[#allocation5] sm:$0xff]
    %v115 = vld [vmem:[#allocation5 + $0x8] sm:$0xff]
    %v116 = vld [vmem:[#allocation5 + $0x10] sm:$0xff]
    %v117 = vld [vmem:[#allocation5 + $0x18] sm:$0xff]
    %v118 = vld [vmem:[#allocation5 + $0x20] sm:$0xff]
    %v119 = vld [vmem:[#allocation5 + $0x28] sm:$0xff]
    %v120 = vld [vmem:[#allocation5 + $0x30] sm:$0xff]
    %v121 = vld [vmem:[#allocation5 + $0x38] sm:$0xff]
    %v122 = vld [vmem:[#allocation5 + $0x40] sm:$0xff]
    %v123 = vld [vmem:[#allocation5 + $0x48] sm:$0xff]
    %v124 = vld [vmem:[#allocation5 + $0x50] sm:$0xff]
    %v125 = vld [vmem:[#allocation5 + $0x58] sm:$0xff]
    %v126 = vld [vmem:[#allocation5 + $0x60] sm:$0xff]
    %v127 = vld [vmem:[#allocation5 + $0x68] sm:$0xff]
    %v128 = vld [vmem:[#allocation5 + $0x70] sm:$0xff]
    %v129 = vld [vmem:[#allocation5 + $0x78] sm:$0xff]
    %v130 = vld [vmem:[#allocation5 + $0x80] sm:$0xff]
    %v131 = vld [vmem:[#allocation5 + $0x88] sm:$0xff]
    %v132 = vld [vmem:[#allocation5 + $0x90] sm:$0xff]
    %v133 = vld [vmem:[#allocation5 + $0x98] sm:$0xff]
    %v134 = vld [vmem:[#allocation5 + $0xa0] sm:$0xff]
    %v135 = vld [vmem:[#allocation5 + $0xa8] sm:$0xff]
    %v136 = vld [vmem:[#allocation5 + $0xb0] sm:$0xff]
    %v137 = vld [vmem:[#allocation5 + $0xb8] sm:$0xff]
    %v138 = vld [vmem:[#allocation5 + $0xc0] sm:$0xff]
    %v139 = vld [vmem:[#allocation5 + $0xc8] sm:$0xff]
    %v140 = vld [vmem:[#allocation5 + $0xd0] sm:$0xff]
    %v141 = vld [vmem:[#allocation5 + $0xd8] sm:$0xff]
    %v142 = vld [vmem:[#allocation5 + $0xe0] sm:$0xff]
    %v143 = vld [vmem:[#allocation5 + $0xe8] sm:$0xff]
    %v144 = vld [vmem:[#allocation5 + $0xf0] sm:$0xff]
    %v145 = vld [vmem:[#allocation5 + $0xf8] sm:$0xff]
    %v146 = vld [vmem:[#allocation5 + $0x100] sm:$0xff]
    %v147 = vld [vmem:[#allocation5 + $0x108] sm:$0xff]
    %v148 = vld [vmem:[#allocation5 + $0x110] sm:$0xff]
    %v149 = vld [vmem:[#allocation5 + $0x118] sm:$0xff]
    %v150 = vld [vmem:[#allocation5 + $0x120] sm:$0xff]
    %v151 = vld [vmem:[#allocation5 + $0x128] sm:$0xff]
    %v152 = vld [vmem:[#allocation5 + $0x130] sm:$0xff]
    %v153 = vld [vmem:[#allocation5 + $0x138] sm:$0xff]
    %v154 = vld [vmem:[#allocation5 + $0x140] sm:$0xff]
    %v155 = vld [vmem:[#allocation5 + $0x148] sm:$0xff]
    %v156 = vld [vmem:[#allocation5 + $0x150] sm:$0xff]
    %v157 = vld [vmem:[#allocation5 + $0x158] sm:$0xff]
    %v158 = vld [vmem:[#allocation5 + $0x160] sm:$0xff]
    %v159 = vld [vmem:[#allocation5 + $0x168] sm:$0xff]
    %v160 = vld [vmem:[#allocation5 + $0x170] sm:$0xff]
    %v161 = vld [vmem:[#allocation5 + $0x178] sm:$0xff]
    %v162 = vld [vmem:[#allocation5 + $0x180] sm:$0xff]
    %v163 = vld [vmem:[#allocation5 + $0x188] sm:$0xff]
    %v164 = vld [vmem:[#allocation5 + $0x190] sm:$0xff]
    %v165 = vld [vmem:[#allocation5 + $0x198] sm:$0xff]
    %v166 = vld [vmem:[#allocation5 + $0x1a0] sm:$0xff]
    %v167 = vld [vmem:[#allocation5 + $0x1a8] sm:$0xff]
    %v168 = vld [vmem:[#allocation5 + $0x1b0] sm:$0xff]
    %v169 = vld [vmem:[#allocation5 + $0x1b8] sm:$0xff]
    %v170 = vld [vmem:[#allocation5 + $0x1c0] sm:$0xff]
    %v171 = vld [vmem:[#allocation5 + $0x1c8] sm:$0xff]
    %v172 = vld [vmem:[#allocation5 + $0x1d0] sm:$0xff]
    %v173 = vld [vmem:[#allocation5 + $0x1d8] sm:$0xff]
    %v174 = vld [vmem:[#allocation5 + $0x1e0] sm:$0xff]
    %v175 = vld [vmem:[#allocation5 + $0x1e8] sm:$0xff]
    %v176 = vld [vmem:[#allocation5 + $0x1f0] sm:$0xff]
    %v177 = vld [vmem:[#allocation5 + $0x1f8] sm:$0xff]
    %v178 = vld [vmem:[%s5] sm:$0x3]
    %v180 = vlaneseq
    %v181 = vshrl.u32 %v180, 7
    %v182 = vsub.s32 0, %v181
    %v183 = vrot.slane %v178, %v182
    %v184 = vlaneseq
    %v185 = vshrl.u32 %v184, 7
    %v186 = vsub.s32 1, %v185
    %v187 = vrot.slane %v178, %v186
    %190 = vmatprep.subr.mxu0 %v115
    %191 = vmatpush1.msra.mxu0 %v114
    %192 = vmatprep.subr.mxu0 %v117
    %193 = vmatpush1.msra.mxu0 %v116
    %194 = vmatprep.subr.mxu0 %v119
    %195 = vmatpush1.msra.mxu0 %v118
    %196 = vmatprep.subr.mxu0 %v121
    %197 = vmatpush1.msra.mxu0 %v120
    %198 = vmatprep.subr.mxu0 %v123
    %199 = vmatpush1.msra.mxu0 %v122
    %200 = vmatprep.subr.mxu0 %v125
    %201 = vmatpush1.msra.mxu0 %v124
    %202 = vmatprep.subr.mxu0 %v127
    %203 = vmatpush1.msra.mxu0 %v126
    %204 = vmatprep.subr.mxu0 %v129
    %205 = vmatpush1.msra.mxu0 %v128
    %206 = vmatprep.subr.mxu0 %v131
    %207 = vmatpush1.msra.mxu0 %v130
    %208 = vmatprep.subr.mxu0 %v133
    %209 = vmatpush1.msra.mxu0 %v132
    %210 = vmatprep.subr.mxu0 %v135
    %211 = vmatpush1.msra.mxu0 %v134
    %212 = vmatprep.subr.mxu0 %v137
    %213 = vmatpush1.msra.mxu0 %v136
    %214 = vmatprep.subr.mxu0 %v139
    %215 = vmatpush1.msra.mxu0 %v138
    %216 = vmatprep.subr.mxu0 %v141
    %217 = vmatpush1.msra.mxu0 %v140
    %218 = vmatprep.subr.mxu0 %v143
    %219 = vmatpush1.msra.mxu0 %v142
    %220 = vmatprep.subr.mxu0 %v145
    %221 = vmatpush1.msra.mxu0 %v144
    %222 = vmatprep.subr.mxu0 %v147
    %223 = vmatpush1.msra.mxu0 %v146
    %224 = vmatprep.subr.mxu0 %v149
    %225 = vmatpush1.msra.mxu0 %v148
    %226 = vmatprep.subr.mxu0 %v151
    %227 = vmatpush1.msra.mxu0 %v150
    %228 = vmatprep.subr.mxu0 %v153
    %229 = vmatpush1.msra.mxu0 %v152
    %230 = vmatprep.subr.mxu0 %v155
    %231 = vmatpush1.msra.mxu0 %v154
    %232 = vmatprep.subr.mxu0 %v157
    %233 = vmatpush1.msra.mxu0 %v156
    %234 = vmatprep.subr.mxu0 %v159
    %235 = vmatpush1.msra.mxu0 %v158
    %236 = vmatprep.subr.mxu0 %v161
    %237 = vmatpush1.msra.mxu0 %v160
    %238 = vmatprep.subr.mxu0 %v163
    %239 = vmatpush1.msra.mxu0 %v162
    %240 = vmatprep.subr.mxu0 %v165
    %241 = vmatpush1.msra.mxu0 %v164
    %242 = vmatprep.subr.mxu0 %v167
    %243 = vmatpush1.msra.mxu0 %v166
    %244 = vmatprep.subr.mxu0 %v169
    %245 = vmatpush1.msra.mxu0 %v168
    %246 = vmatprep.subr.mxu0 %v171
    %247 = vmatpush1.msra.mxu0 %v170
    %248 = vmatprep.subr.mxu0 %v173
    %249 = vmatpush1.msra.mxu0 %v172
    %250 = vmatprep.subr.mxu0 %v175
    %251 = vmatpush1.msra.mxu0 %v174
    %252 = vmatprep.subr.mxu0 %v177
    %253 = vmatpush1.msra.mxu0 %v176
    %254 = vmatprep.mubr.f32.mxu0 %v111
    %255 = vmatmul.mubr.f32.gmra.mrb[0].mxu0 %v110
    %v256 = vpop.f32.mrb[0].mxu0
    %v257 = vadd.f32 %v183, %v256
    %v258 = vpop.f32.mrb[0].mxu0
    %v259 = vadd.f32 %v187, %v258
    %260 = vmatprep.mubr.f32.mxu0 %v113
    %261 = vmatmul.mubr.f32.gmra.mrb[0].mxu0 %v112
    %v262 = vpop.f32.mrb[0].mxu0
    %v263 = vadd.f32 %v183, %v262
    %v264 = vpop.f32.mrb[0].mxu0
    %v265 = vadd.f32 %v187, %v264
    %266 = vdwg.mxu0
    %v267 = vld [vmem:[%s2] sm:$0xff]
    %v268 = vld [vmem:[%s2 + $0x8] sm:$0xff]
    %v269 = vld [vmem:[%s2 + $0x10] sm:$0xff]
    %v270 = vld [vmem:[%s2 + $0x18] sm:$0xff]
    %v271 = vld [vmem:[%s2 + $0x20] sm:$0xff]
    %v272 = vld [vmem:[%s2 + $0x28] sm:$0xff]
    %v273 = vld [vmem:[%s2 + $0x30] sm:$0xff]
    %v274 = vld [vmem:[%s2 + $0x38] sm:$0xff]
    %v275 = vld [vmem:[%s2 + $0x40] sm:$0xff]
    %v276 = vld [vmem:[%s2 + $0x48] sm:$0xff]
    %v277 = vld [vmem:[%s2 + $0x50] sm:$0xff]
    %v278 = vld [vmem:[%s2 + $0x58] sm:$0xff]
    %v279 = vld [vmem:[%s2 + $0x60] sm:$0xff]
    %v280 = vld [vmem:[%s2 + $0x68] sm:$0xff]
    %v281 = vld [vmem:[%s2 + $0x70] sm:$0xff]
    %v282 = vld [vmem:[%s2 + $0x78] sm:$0xff]
    %v283 = vld [vmem:[%s3] sm:$0xf]
    %v284 = vld [vmem:[%s1] sm:$0x1]
    %v286 = vlaneseq
    %v287 = vshrl.u32 %v286, 7
    %v288 = vsub.s32 0, %v287
    %v289 = vrot.slane %v284, %v288
    %v291 = vmul.f32 %v257, %v289
    %v292 = vmul.f32 %v263, %v289
    %293 = vmatprep.subr.mxu0 0.0
    %294 = vmatpush1.msra.mxu0 %v267
    %295 = vmatprep.subr.mxu0 0.0
    %296 = vmatpush1.msra.mxu0 %v268
    %297 = vmatprep.subr.mxu0 0.0
    %298 = vmatpush1.msra.mxu0 %v269
    %299 = vmatprep.subr.mxu0 0.0
    %300 = vmatpush1.msra.mxu0 %v270
    %301 = vmatprep.subr.mxu0 0.0
    %302 = vmatpush1.msra.mxu0 %v271
    %303 = vmatprep.subr.mxu0 0.0
    %304 = vmatpush1.msra.mxu0 %v272
    %305 = vmatprep.subr.mxu0 0.0
    %306 = vmatpush1.msra.mxu0 %v273
    %307 = vmatprep.subr.mxu0 0.0
    %308 = vmatpush1.msra.mxu0 %v274
    %309 = vmatprep.subr.mxu0 0.0
    %310 = vmatpush1.msra.mxu0 %v275
    %311 = vmatprep.subr.mxu0 0.0
    %312 = vmatpush1.msra.mxu0 %v276
    %313 = vmatprep.subr.mxu0 0.0
    %314 = vmatpush1.msra.mxu0 %v277
    %315 = vmatprep.subr.mxu0 0.0
    %316 = vmatpush1.msra.mxu0 %v278
    %317 = vmatprep.subr.mxu0 0.0
    %318 = vmatpush1.msra.mxu0 %v279
    %319 = vmatprep.subr.mxu0 0.0
    %320 = vmatpush1.msra.mxu0 %v280
    %321 = vmatprep.subr.mxu0 0.0
    %322 = vmatpush1.msra.mxu0 %v281
    %323 = vmatprep.subr.mxu0 0.0
    %324 = vmatpush1.msra.mxu0 %v282
    %325 = vmatprep.subr.mxu0 0.0
    %326 = vmatpush1.msra.mxu0 0.0
    %327 = vmatprep.subr.mxu0 0.0
    %328 = vmatpush1.msra.mxu0 0.0
    %329 = vmatprep.subr.mxu0 0.0
    %330 = vmatpush1.msra.mxu0 0.0
    %331 = vmatprep.subr.mxu0 0.0
    %332 = vmatpush1.msra.mxu0 0.0
    %333 = vmatprep.subr.mxu0 0.0
    %334 = vmatpush1.msra.mxu0 0.0
    %335 = vmatprep.subr.mxu0 0.0
    %336 = vmatpush1.msra.mxu0 0.0
    %337 = vmatprep.subr.mxu0 0.0
    %338 = vmatpush1.msra.mxu0 0.0
    %339 = vmatprep.subr.mxu0 0.0
    %340 = vmatpush1.msra.mxu0 0.0
    %341 = vmatprep.subr.mxu0 0.0
    %342 = vmatpush1.msra.mxu0 0.0
    %343 = vmatprep.subr.mxu0 0.0
    %344 = vmatpush1.msra.mxu0 0.0
    %345 = vmatprep.subr.mxu0 0.0
    %346 = vmatpush1.msra.mxu0 0.0
    %347 = vmatprep.subr.mxu0 0.0
    %348 = vmatpush1.msra.mxu0 0.0
    %349 = vmatprep.subr.mxu0 0.0
    %350 = vmatpush1.msra.mxu0 0.0
    %351 = vmatprep.subr.mxu0 0.0
    %352 = vmatpush1.msra.mxu0 0.0
    %353 = vmatprep.subr.mxu0 0.0
    %354 = vmatpush1.msra.mxu0 0.0
    %355 = vmatprep.subr.mxu0 0.0
    %356 = vmatpush1.msra.mxu0 0.0
    %357 = vmatprep.mubr.f32.mxu0 0.0
    %358 = vmatmul.mubr.f32.gmra.mrb[0].mxu0 %v291
    %v359 = vpop.f32.mrb[0].mxu0
    %v360 = vadd.f32 0.0, %v359
    %v361 = vpop.f32.mrb[0].mxu0
    %362 = vmatprep.mubr.f32.mxu0 0.0
    %363 = vmatmul.mubr.f32.gmra.mrb[0].mxu0 %v292
    %v364 = vpop.f32.mrb[0].mxu0
    %v365 = vadd.f32 0.0, %v364
    %v366 = vpop.f32.mrb[0].mxu0
    %367 = vdwg.mxu0
    %vm368 = vcmask 31744
    %v369 = vsel %vm368, %v360, -inf
    %v370 = vrot.slane %v369, 4
    %v371 = vmax.f32 %v369, %v370
    %v372 = vrot.slane %v371, 2
    %v373 = vmax.f32 %v371, %v372
    %v374 = vrot.slane %v373, 1
    %v375 = vmax.f32 %v373, %v374
    %v376 = vsel %vm368, %v365, -inf
    %v377 = vrot.slane %v376, 4
    %v378 = vmax.f32 %v376, %v377
    %v379 = vrot.slane %v378, 2
    %v380 = vmax.f32 %v378, %v379
    %v381 = vrot.slane %v380, 1
    %v382 = vmax.f32 %v380, %v381
    %v383 = vsub.f32 %v360, %v375
    %v384 = vsub.f32 %v365, %v382
    %v385 = vmul.f32 %v383, 1.442695
    %v386 = vpow.pop %v385
    %v387 = vmul.f32 %v384, 1.442695
    %v388 = vpow.pop %v387
    %v389 = vsel %vm368, %v386, 0.0
    %v390 = vrot.slane %v389, 4
    %v391 = vadd.f32 %v389, %v390
    %v392 = vrot.slane %v391, 2
    %v393 = vadd.f32 %v391, %v392
    %v394 = vrot.slane %v393, 1
    %v395 = vadd.f32 %v393, %v394
    %v396 = vsel %vm368, %v388, 0.0
    %v397 = vrot.slane %v396, 4
    %v398 = vadd.f32 %v396, %v397
    %v399 = vrot.slane %v398, 2
    %v400 = vadd.f32 %v398, %v399
    %v401 = vrot.slane %v400, 1
    %v402 = vadd.f32 %v400, %v401
    %v403 = vrcp.pop %v395
    %v404 = vrcp.pop %v402
    %v405 = vmul.f32 %v386, %v403
    %v406 = vmul.f32 %v388, %v404
    %v408 = vsel %vm368, %v405, 0
    %v411 = vsel %vm368, %v406, 0
    %vm413 = vcmask 1043456
    %v415 = vsel %vm413, %v283, 0
    %417 = vmatprep.subr.mxu0 0.0
    %418 = vmatpush1.msra.mxu0 %v415
    %419 = vmatprep.subr.mxu0 0.0
    %420 = vmatpush1.msra.mxu0 0.0
    %421 = vmatprep.subr.mxu0 0.0
    %422 = vmatpush1.msra.mxu0 0.0
    %423 = vmatprep.subr.mxu0 0.0
    %424 = vmatpush1.msra.mxu0 0.0
    %425 = vmatprep.subr.mxu0 0.0
    %426 = vmatpush1.msra.mxu0 0.0
    %427 = vmatprep.subr.mxu0 0.0
    %428 = vmatpush1.msra.mxu0 0.0
    %429 = vmatprep.subr.mxu0 0.0
    %430 = vmatpush1.msra.mxu0 0.0
    %431 = vmatprep.subr.mxu0 0.0
    %432 = vmatpush1.msra.mxu0 0.0
    %433 = vmatprep.subr.mxu0 0.0
    %434 = vmatpush1.msra.mxu0 0.0
    %435 = vmatprep.subr.mxu0 0.0
    %436 = vmatpush1.msra.mxu0 0.0
    %437 = vmatprep.subr.mxu0 0.0
    %438 = vmatpush1.msra.mxu0 0.0
    %439 = vmatprep.subr.mxu0 0.0
    %440 = vmatpush1.msra.mxu0 0.0
    %441 = vmatprep.subr.mxu0 0.0
    %442 = vmatpush1.msra.mxu0 0.0
    %443 = vmatprep.subr.mxu0 0.0
    %444 = vmatpush1.msra.mxu0 0.0
    %445 = vmatprep.subr.mxu0 0.0
    %446 = vmatpush1.msra.mxu0 0.0
    %447 = vmatprep.subr.mxu0 0.0
    %448 = vmatpush1.msra.mxu0 0.0
    %449 = vmatprep.subr.mxu0 0.0
    %450 = vmatpush1.msra.mxu0 0.0
    %451 = vmatprep.subr.mxu0 0.0
    %452 = vmatpush1.msra.mxu0 0.0
    %453 = vmatprep.subr.mxu0 0.0
    %454 = vmatpush1.msra.mxu0 0.0
    %455 = vmatprep.subr.mxu0 0.0
    %456 = vmatpush1.msra.mxu0 0.0
    %457 = vmatprep.subr.mxu0 0.0
    %458 = vmatpush1.msra.mxu0 0.0
    %459 = vmatprep.subr.mxu0 0.0
    %460 = vmatpush1.msra.mxu0 0.0
    %461 = vmatprep.subr.mxu0 0.0
    %462 = vmatpush1.msra.mxu0 0.0
    %463 = vmatprep.subr.mxu0 0.0
    %464 = vmatpush1.msra.mxu0 0.0
    %465 = vmatprep.subr.mxu0 0.0
    %466 = vmatpush1.msra.mxu0 0.0
    %467 = vmatprep.subr.mxu0 0.0
    %468 = vmatpush1.msra.mxu0 0.0
    %469 = vmatprep.subr.mxu0 0.0
    %470 = vmatpush1.msra.mxu0 0.0
    %471 = vmatprep.subr.mxu0 0.0
    %472 = vmatpush1.msra.mxu0 0.0
    %473 = vmatprep.subr.mxu0 0.0
    %474 = vmatpush1.msra.mxu0 0.0
    %475 = vmatprep.subr.mxu0 0.0
    %476 = vmatpush1.msra.mxu0 0.0
    %477 = vmatprep.subr.mxu0 0.0
    %478 = vmatpush1.msra.mxu0 0.0
    %479 = vmatprep.subr.mxu0 0.0
    %480 = vmatpush1.msra.mxu0 0.0
    %481 = vmatprep.mubr.f32.mxu0 0.0
    %482 = vmatmul.mubr.f32.gmra.mrb[0].mxu0 %v408
    %v483 = vpop.f32.mrb[0].mxu0
    %v484 = vadd.f32 0.0, %v483
    %v485 = vpop.f32.mrb[0].mxu0
    %486 = vmatprep.mubr.f32.mxu0 0.0
    %487 = vmatmul.mubr.f32.gmra.mrb[0].mxu0 %v411
    %v488 = vpop.f32.mrb[0].mxu0
    %v489 = vadd.f32 0.0, %v488
    %v490 = vpop.f32.mrb[0].mxu0
    %491 = vdwg.mxu0
    %v492 = vmul.f32 %v484, %v257
    %v493 = vmul.f32 %v489, %v263
    %v494 = vrot.slane %v492, 4
    %v495 = vadd.f32 %v492, %v494
    %v496 = vrot.slane %v495, 2
    %v497 = vadd.f32 %v495, %v496
    %v498 = vrot.slane %v497, 1
    %v499 = vadd.f32 %v497, %v498
    %v500 = vrot.slane %v493, 4
    %v501 = vadd.f32 %v493, %v500
    %v502 = vrot.slane %v501, 2
    %v503 = vadd.f32 %v501, %v502
    %v504 = vrot.slane %v503, 1
    %v505 = vadd.f32 %v503, %v504
    %v506 = vmul.f32 %v257, %v499
    %v507 = vmul.f32 %v263, %v505
    %508 = vmatprep.subr.mxu0 0.0
    %509 = vmatpush1.msra.mxu0 %v267
    %510 = vmatprep.subr.mxu0 0.0
    %511 = vmatpush1.msra.mxu0 %v268
    %512 = vmatprep.subr.mxu0 0.0
    %513 = vmatpush1.msra.mxu0 %v269
    %514 = vmatprep.subr.mxu0 0.0
    %515 = vmatpush1.msra.mxu0 %v270
    %516 = vmatprep.subr.mxu0 0.0
    %517 = vmatpush1.msra.mxu0 %v271
    %518 = vmatprep.subr.mxu0 0.0
    %519 = vmatpush1.msra.mxu0 %v272
    %520 = vmatprep.subr.mxu0 0.0
    %521 = vmatpush1.msra.mxu0 %v273
    %522 = vmatprep.subr.mxu0 0.0
    %523 = vmatpush1.msra.mxu0 %v274
    %524 = vmatprep.subr.mxu0 0.0
    %525 = vmatpush1.msra.mxu0 %v275
    %526 = vmatprep.subr.mxu0 0.0
    %527 = vmatpush1.msra.mxu0 %v276
    %528 = vmatprep.subr.mxu0 0.0
    %529 = vmatpush1.msra.mxu0 %v277
    %530 = vmatprep.subr.mxu0 0.0
    %531 = vmatpush1.msra.mxu0 %v278
    %532 = vmatprep.subr.mxu0 0.0
    %533 = vmatpush1.msra.mxu0 %v279
    %534 = vmatprep.subr.mxu0 0.0
    %535 = vmatpush1.msra.mxu0 %v280
    %536 = vmatprep.subr.mxu0 0.0
    %537 = vmatpush1.msra.mxu0 %v281
    %538 = vmatprep.subr.mxu0 0.0
    %539 = vmatpush1.msra.mxu0 %v282
    %540 = vmatprep.subr.mxu0 0.0
    %541 = vmatpush1.msra.mxu0 0.0
    %542 = vmatprep.subr.mxu0 0.0
    %543 = vmatpush1.msra.mxu0 0.0
    %544 = vmatprep.subr.mxu0 0.0
    %545 = vmatpush1.msra.mxu0 0.0
    %546 = vmatprep.subr.mxu0 0.0
    %547 = vmatpush1.msra.mxu0 0.0
    %548 = vmatprep.subr.mxu0 0.0
    %549 = vmatpush1.msra.mxu0 0.0
    %550 = vmatprep.subr.mxu0 0.0
    %551 = vmatpush1.msra.mxu0 0.0
    %552 = vmatprep.subr.mxu0 0.0
    %553 = vmatpush1.msra.mxu0 0.0
    %554 = vmatprep.subr.mxu0 0.0
    %555 = vmatpush1.msra.mxu0 0.0
    %556 = vmatprep.subr.mxu0 0.0
    %557 = vmatpush1.msra.mxu0 0.0
    %558 = vmatprep.subr.mxu0 0.0
    %559 = vmatpush1.msra.mxu0 0.0
    %560 = vmatprep.subr.mxu0 0.0
    %561 = vmatpush1.msra.mxu0 0.0
    %562 = vmatprep.subr.mxu0 0.0
    %563 = vmatpush1.msra.mxu0 0.0
    %564 = vmatprep.subr.mxu0 0.0
    %565 = vmatpush1.msra.mxu0 0.0
    %566 = vmatprep.subr.mxu0 0.0
    %567 = vmatpush1.msra.mxu0 0.0
    %568 = vmatprep.subr.mxu0 0.0
    %569 = vmatpush1.msra.mxu0 0.0
    %570 = vmatprep.subr.mxu0 0.0
    %571 = vmatpush1.msra.mxu0 0.0
    %572 = vmatprep.mubr.f32.mxu0 0.0
    %573 = vmatmul.mubr.f32.gmra.mrb[0].mxu0 %v506
    %v574 = vpop.f32.mrb[0].mxu0
    %v575 = vadd.f32 0.0, %v574
    %v576 = vpop.f32.mrb[0].mxu0
    %577 = vmatprep.mubr.f32.mxu0 0.0
    %578 = vmatmul.mubr.f32.gmra.mrb[0].mxu0 %v507
    %v579 = vpop.f32.mrb[0].mxu0
    %v580 = vadd.f32 0.0, %v579
    %v581 = vpop.f32.mrb[0].mxu0
    %582 = vdwg.mxu0
    %v583 = vsel %vm368, %v575, -inf
    %v584 = vrot.slane %v583, 4
    %v585 = vmax.f32 %v583, %v584
    %v586 = vrot.slane %v585, 2
    %v587 = vmax.f32 %v585, %v586
    %v588 = vrot.slane %v587, 1
    %v589 = vmax.f32 %v587, %v588
    %v590 = vsel %vm368, %v580, -inf
    %v591 = vrot.slane %v590, 4
    %v592 = vmax.f32 %v590, %v591
    %v593 = vrot.slane %v592, 2
    %v594 = vmax.f32 %v592, %v593
    %v595 = vrot.slane %v594, 1
    %v596 = vmax.f32 %v594, %v595
    %v597 = vsub.f32 %v575, %v589
    %v598 = vsub.f32 %v580, %v596
    %v599 = vmul.f32 %v597, 1.442695
    %v600 = vpow.pop %v599
    %v601 = vmul.f32 %v598, 1.442695
    %v602 = vpow.pop %v601
    %v603 = vsel %vm368, %v600, 0.0
    %v604 = vrot.slane %v603, 4
    %v605 = vadd.f32 %v603, %v604
    %v606 = vrot.slane %v605, 2
    %v607 = vadd.f32 %v605, %v606
    %v608 = vrot.slane %v607, 1
    %v609 = vadd.f32 %v607, %v608
    %v610 = vsel %vm368, %v602, 0.0
    %v611 = vrot.slane %v610, 4
    %v612 = vadd.f32 %v610, %v611
    %v613 = vrot.slane %v612, 2
    %v614 = vadd.f32 %v612, %v613
    %v615 = vrot.slane %v614, 1
    %v616 = vadd.f32 %v614, %v615
    %v617 = vrcp.pop %v609
    %v618 = vrcp.pop %v616
    %v619 = vmul.f32 %v600, %v617
    %v620 = vmul.f32 %v602, %v618
    %v622 = vsel %vm368, %v619, 0
    %v625 = vsel %vm368, %v620, 0
    %627 = vmatprep.subr.mxu0 0.0
    %628 = vmatpush1.msra.mxu0 %v415
    %629 = vmatprep.subr.mxu0 0.0
    %630 = vmatpush1.msra.mxu0 0.0
    %631 = vmatprep.subr.mxu0 0.0
    %632 = vmatpush1.msra.mxu0 0.0
    %633 = vmatprep.subr.mxu0 0.0
    %634 = vmatpush1.msra.mxu0 0.0
    %635 = vmatprep.subr.mxu0 0.0
    %636 = vmatpush1.msra.mxu0 0.0
    %637 = vmatprep.subr.mxu0 0.0
    %638 = vmatpush1.msra.mxu0 0.0
    %639 = vmatprep.subr.mxu0 0.0
    %640 = vmatpush1.msra.mxu0 0.0
    %641 = vmatprep.subr.mxu0 0.0
    %642 = vmatpush1.msra.mxu0 0.0
    %643 = vmatprep.subr.mxu0 0.0
    %644 = vmatpush1.msra.mxu0 0.0
    %645 = vmatprep.subr.mxu0 0.0
    %646 = vmatpush1.msra.mxu0 0.0
    %647 = vmatprep.subr.mxu0 0.0
    %648 = vmatpush1.msra.mxu0 0.0
    %649 = vmatprep.subr.mxu0 0.0
    %650 = vmatpush1.msra.mxu0 0.0
    %651 = vmatprep.subr.mxu0 0.0
    %652 = vmatpush1.msra.mxu0 0.0
    %653 = vmatprep.subr.mxu0 0.0
    %654 = vmatpush1.msra.mxu0 0.0
    %655 = vmatprep.subr.mxu0 0.0
    %656 = vmatpush1.msra.mxu0 0.0
    %657 = vmatprep.subr.mxu0 0.0
    %658 = vmatpush1.msra.mxu0 0.0
    %659 = vmatprep.subr.mxu0 0.0
    %660 = vmatpush1.msra.mxu0 0.0
    %661 = vmatprep.subr.mxu0 0.0
    %662 = vmatpush1.msra.mxu0 0.0
    %663 = vmatprep.subr.mxu0 0.0
    %664 = vmatpush1.msra.mxu0 0.0
    %665 = vmatprep.subr.mxu0 0.0
    %666 = vmatpush1.msra.mxu0 0.0
    %667 = vmatprep.subr.mxu0 0.0
    %668 = vmatpush1.msra.mxu0 0.0
    %669 = vmatprep.subr.mxu0 0.0
    %670 = vmatpush1.msra.mxu0 0.0
    %671 = vmatprep.subr.mxu0 0.0
    %672 = vmatpush1.msra.mxu0 0.0
    %673 = vmatprep.subr.mxu0 0.0
    %674 = vmatpush1.msra.mxu0 0.0
    %675 = vmatprep.subr.mxu0 0.0
    %676 = vmatpush1.msra.mxu0 0.0
    %677 = vmatprep.subr.mxu0 0.0
    %678 = vmatpush1.msra.mxu0 0.0
    %679 = vmatprep.subr.mxu0 0.0
    %680 = vmatpush1.msra.mxu0 0.0
    %681 = vmatprep.subr.mxu0 0.0
    %682 = vmatpush1.msra.mxu0 0.0
    %683 = vmatprep.subr.mxu0 0.0
    %684 = vmatpush1.msra.mxu0 0.0
    %685 = vmatprep.subr.mxu0 0.0
    %686 = vmatpush1.msra.mxu0 0.0
    %687 = vmatprep.subr.mxu0 0.0
    %688 = vmatpush1.msra.mxu0 0.0
    %689 = vmatprep.subr.mxu0 0.0
    %690 = vmatpush1.msra.mxu0 0.0
    %691 = vmatprep.mubr.f32.mxu0 0.0
    %692 = vmatmul.mubr.f32.gmra.mrb[0].mxu0 %v622
    %v693 = vpop.f32.mrb[0].mxu0
    %v694 = vadd.f32 0.0, %v693
    %v695 = vpop.f32.mrb[0].mxu0
    %696 = vmatprep.mubr.f32.mxu0 0.0
    %697 = vmatmul.mubr.f32.gmra.mrb[0].mxu0 %v625
    %v698 = vpop.f32.mrb[0].mxu0
    %v699 = vadd.f32 0.0, %v698
    %v700 = vpop.f32.mrb[0].mxu0
    %701 = vdwg.mxu0
    %v702 = vmul.f32 %v694, %v257
    %v703 = vmul.f32 %v699, %v263
    %v704 = vrot.slane %v702, 4
    %v705 = vadd.f32 %v702, %v704
    %v706 = vrot.slane %v705, 2
    %v707 = vadd.f32 %v705, %v706
    %v708 = vrot.slane %v707, 1
    %v709 = vadd.f32 %v707, %v708
    %v710 = vrot.slane %v703, 4
    %v711 = vadd.f32 %v703, %v710
    %v712 = vrot.slane %v711, 2
    %v713 = vadd.f32 %v711, %v712
    %v714 = vrot.slane %v713, 1
    %v715 = vadd.f32 %v713, %v714
    %v716 = vmul.f32 %v257, %v709
    %v717 = vmul.f32 %v263, %v715
    %718 = vmatprep.subr.mxu0 0.0
    %719 = vmatpush1.msra.mxu0 %v267
    %720 = vmatprep.subr.mxu0 0.0
    %721 = vmatpush1.msra.mxu0 %v268
    %722 = vmatprep.subr.mxu0 0.0
    %723 = vmatpush1.msra.mxu0 %v269
    %724 = vmatprep.subr.mxu0 0.0
    %725 = vmatpush1.msra.mxu0 %v270
    %726 = vmatprep.subr.mxu0 0.0
    %727 = vmatpush1.msra.mxu0 %v271
    %728 = vmatprep.subr.mxu0 0.0
    %729 = vmatpush1.msra.mxu0 %v272
    %730 = vmatprep.subr.mxu0 0.0
    %731 = vmatpush1.msra.mxu0 %v273
    %732 = vmatprep.subr.mxu0 0.0
    %733 = vmatpush1.msra.mxu0 %v274
    %734 = vmatprep.subr.mxu0 0.0
    %735 = vmatpush1.msra.mxu0 %v275
    %736 = vmatprep.subr.mxu0 0.0
    %737 = vmatpush1.msra.mxu0 %v276
    %738 = vmatprep.subr.mxu0 0.0
    %739 = vmatpush1.msra.mxu0 %v277
    %740 = vmatprep.subr.mxu0 0.0
    %741 = vmatpush1.msra.mxu0 %v278
    %742 = vmatprep.subr.mxu0 0.0
    %743 = vmatpush1.msra.mxu0 %v279
    %744 = vmatprep.subr.mxu0 0.0
    %745 = vmatpush1.msra.mxu0 %v280
    %746 = vmatprep.subr.mxu0 0.0
    %747 = vmatpush1.msra.mxu0 %v281
    %748 = vmatprep.subr.mxu0 0.0
    %749 = vmatpush1.msra.mxu0 %v282
    %750 = vmatprep.subr.mxu0 0.0
    %751 = vmatpush1.msra.mxu0 0.0
    %752 = vmatprep.subr.mxu0 0.0
    %753 = vmatpush1.msra.mxu0 0.0
    %754 = vmatprep.subr.mxu0 0.0
    %755 = vmatpush1.msra.mxu0 0.0
    %756 = vmatprep.subr.mxu0 0.0
    %757 = vmatpush1.msra.mxu0 0.0
    %758 = vmatprep.subr.mxu0 0.0
    %759 = vmatpush1.msra.mxu0 0.0
    %760 = vmatprep.subr.mxu0 0.0
    %761 = vmatpush1.msra.mxu0 0.0
    %762 = vmatprep.subr.mxu0 0.0
    %763 = vmatpush1.msra.mxu0 0.0
    %764 = vmatprep.subr.mxu0 0.0
    %765 = vmatpush1.msra.mxu0 0.0
    %766 = vmatprep.subr.mxu0 0.0
    %767 = vmatpush1.msra.mxu0 0.0
    %768 = vmatprep.subr.mxu0 0.0
    %769 = vmatpush1.msra.mxu0 0.0
    %770 = vmatprep.subr.mxu0 0.0
    %771 = vmatpush1.msra.mxu0 0.0
    %772 = vmatprep.subr.mxu0 0.0
    %773 = vmatpush1.msra.mxu0 0.0
    %774 = vmatprep.subr.mxu0 0.0
    %775 = vmatpush1.msra.mxu0 0.0
    %776 = vmatprep.subr.mxu0 0.0
    %777 = vmatpush1.msra.mxu0 0.0
    %778 = vmatprep.subr.mxu0 0.0
    %779 = vmatpush1.msra.mxu0 0.0
    %780 = vmatprep.subr.mxu0 0.0
    %781 = vmatpush1.msra.mxu0 0.0
    %782 = vmatprep.mubr.f32.mxu0 0.0
    %783 = vmatmul.mubr.f32.gmra.mrb[0].mxu0 %v716
    %v784 = vpop.f32.mrb[0].mxu0
    %v785 = vadd.f32 0.0, %v784
    %v786 = vpop.f32.mrb[0].mxu0
    %787 = vmatprep.mubr.f32.mxu0 0.0
    %788 = vmatmul.mubr.f32.gmra.mrb[0].mxu0 %v717
    %v789 = vpop.f32.mrb[0].mxu0
    %v790 = vadd.f32 0.0, %v789
    %v791 = vpop.f32.mrb[0].mxu0
    %792 = vdwg.mxu0
    %v793 = vsel %vm368, %v785, -inf
    %v794 = vrot.slane %v793, 4
    %v795 = vmax.f32 %v793, %v794
    %v796 = vrot.slane %v795, 2
    %v797 = vmax.f32 %v795, %v796
    %v798 = vrot.slane %v797, 1
    %v799 = vmax.f32 %v797, %v798
    %v800 = vsel %vm368, %v790, -inf
    %v801 = vrot.slane %v800, 4
    %v802 = vmax.f32 %v800, %v801
    %v803 = vrot.slane %v802, 2
    %v804 = vmax.f32 %v802, %v803
    %v805 = vrot.slane %v804, 1
    %v806 = vmax.f32 %v804, %v805
    %v807 = vsub.f32 %v785, %v799
    %v808 = vsub.f32 %v790, %v806
    %v809 = vmul.f32 %v807, 1.442695
    %v810 = vpow.pop %v809
    %v811 = vmul.f32 %v808, 1.442695
    %v812 = vpow.pop %v811
    %v813 = vsel %vm368, %v810, 0.0
    %v814 = vrot.slane %v813, 4
    %v815 = vadd.f32 %v813, %v814
    %v816 = vrot.slane %v815, 2
    %v817 = vadd.f32 %v815, %v816
    %v818 = vrot.slane %v817, 1
    %v819 = vadd.f32 %v817, %v818
    %v820 = vsel %vm368, %v812, 0.0
    %v821 = vrot.slane %v820, 4
    %v822 = vadd.f32 %v820, %v821
    %v823 = vrot.slane %v822, 2
    %v824 = vadd.f32 %v822, %v823
    %v825 = vrot.slane %v824, 1
    %v826 = vadd.f32 %v824, %v825
    %v827 = vrcp.pop %v819
    %v828 = vrcp.pop %v826
    %v829 = vmul.f32 %v810, %v827
    %v830 = vmul.f32 %v812, %v828
    %v832 = vsel %vm368, %v829, 0
    %v835 = vsel %vm368, %v830, 0
    %837 = vmatprep.subr.mxu0 0.0
    %838 = vmatpush1.msra.mxu0 %v415
    %839 = vmatprep.subr.mxu0 0.0
    %840 = vmatpush1.msra.mxu0 0.0
    %841 = vmatprep.subr.mxu0 0.0
    %842 = vmatpush1.msra.mxu0 0.0
    %843 = vmatprep.subr.mxu0 0.0
    %844 = vmatpush1.msra.mxu0 0.0
    %845 = vmatprep.subr.mxu0 0.0
    %846 = vmatpush1.msra.mxu0 0.0
    %847 = vmatprep.subr.mxu0 0.0
    %848 = vmatpush1.msra.mxu0 0.0
    %849 = vmatprep.subr.mxu0 0.0
    %850 = vmatpush1.msra.mxu0 0.0
    %851 = vmatprep.subr.mxu0 0.0
    %852 = vmatpush1.msra.mxu0 0.0
    %853 = vmatprep.subr.mxu0 0.0
    %854 = vmatpush1.msra.mxu0 0.0
    %855 = vmatprep.subr.mxu0 0.0
    %856 = vmatpush1.msra.mxu0 0.0
    %857 = vmatprep.subr.mxu0 0.0
    %858 = vmatpush1.msra.mxu0 0.0
    %859 = vmatprep.subr.mxu0 0.0
    %860 = vmatpush1.msra.mxu0 0.0
    %861 = vmatprep.subr.mxu0 0.0
    %862 = vmatpush1.msra.mxu0 0.0
    %863 = vmatprep.subr.mxu0 0.0
    %864 = vmatpush1.msra.mxu0 0.0
    %865 = vmatprep.subr.mxu0 0.0
    %866 = vmatpush1.msra.mxu0 0.0
    %867 = vmatprep.subr.mxu0 0.0
    %868 = vmatpush1.msra.mxu0 0.0
    %869 = vmatprep.subr.mxu0 0.0
    %870 = vmatpush1.msra.mxu0 0.0
    %871 = vmatprep.subr.mxu0 0.0
    %872 = vmatpush1.msra.mxu0 0.0
    %873 = vmatprep.subr.mxu0 0.0
    %874 = vmatpush1.msra.mxu0 0.0
    %875 = vmatprep.subr.mxu0 0.0
    %876 = vmatpush1.msra.mxu0 0.0
    %877 = vmatprep.subr.mxu0 0.0
    %878 = vmatpush1.msra.mxu0 0.0
    %879 = vmatprep.subr.mxu0 0.0
    %880 = vmatpush1.msra.mxu0 0.0
    %881 = vmatprep.subr.mxu0 0.0
    %882 = vmatpush1.msra.mxu0 0.0
    %883 = vmatprep.subr.mxu0 0.0
    %884 = vmatpush1.msra.mxu0 0.0
    %885 = vmatprep.subr.mxu0 0.0
    %886 = vmatpush1.msra.mxu0 0.0
    %887 = vmatprep.subr.mxu0 0.0
    %888 = vmatpush1.msra.mxu0 0.0
    %889 = vmatprep.subr.mxu0 0.0
    %890 = vmatpush1.msra.mxu0 0.0
    %891 = vmatprep.subr.mxu0 0.0
    %892 = vmatpush1.msra.mxu0 0.0
    %893 = vmatprep.subr.mxu0 0.0
    %894 = vmatpush1.msra.mxu0 0.0
    %895 = vmatprep.subr.mxu0 0.0
    %896 = vmatpush1.msra.mxu0 0.0
    %897 = vmatprep.subr.mxu0 0.0
    %898 = vmatpush1.msra.mxu0 0.0
    %899 = vmatprep.subr.mxu0 0.0
    %900 = vmatpush1.msra.mxu0 0.0
    %901 = vmatprep.mubr.f32.mxu0 0.0
    %902 = vmatmul.mubr.f32.gmra.mrb[0].mxu0 %v832
    %v903 = vpop.f32.mrb[0].mxu0
    %v904 = vadd.f32 0.0, %v903
    %v905 = vpop.f32.mrb[0].mxu0
    %906 = vmatprep.mubr.f32.mxu0 0.0
    %907 = vmatmul.mubr.f32.gmra.mrb[0].mxu0 %v835
    %v908 = vpop.f32.mrb[0].mxu0
    %v909 = vadd.f32 0.0, %v908
    %v910 = vpop.f32.mrb[0].mxu0
    %911 = vdwg.mxu0
    %v912 = vmul.f32 %v904, %v257
    %v913 = vmul.f32 %v909, %v263
    %v914 = vrot.slane %v912, 4
    %v915 = vadd.f32 %v912, %v914
    %v916 = vrot.slane %v915, 2
    %v917 = vadd.f32 %v915, %v916
    %v918 = vrot.slane %v917, 1
    %v919 = vadd.f32 %v917, %v918
    %v920 = vrot.slane %v913, 4
    %v921 = vadd.f32 %v913, %v920
    %v922 = vrot.slane %v921, 2
    %v923 = vadd.f32 %v921, %v922
    %v924 = vrot.slane %v923, 1
    %v925 = vadd.f32 %v923, %v924
    %v926 = vmul.f32 %v257, %v919
    %v927 = vmul.f32 %v263, %v925
    %928 = vmatprep.subr.mxu0 0.0
    %929 = vmatpush1.msra.mxu0 %v267
    %930 = vmatprep.subr.mxu0 0.0
    %931 = vmatpush1.msra.mxu0 %v268
    %932 = vmatprep.subr.mxu0 0.0
    %933 = vmatpush1.msra.mxu0 %v269
    %934 = vmatprep.subr.mxu0 0.0
    %935 = vmatpush1.msra.mxu0 %v270
    %936 = vmatprep.subr.mxu0 0.0
    %937 = vmatpush1.msra.mxu0 %v271
    %938 = vmatprep.subr.mxu0 0.0
    %939 = vmatpush1.msra.mxu0 %v272
    %940 = vmatprep.subr.mxu0 0.0
    %941 = vmatpush1.msra.mxu0 %v273
    %942 = vmatprep.subr.mxu0 0.0
    %943 = vmatpush1.msra.mxu0 %v274
    %944 = vmatprep.subr.mxu0 0.0
    %945 = vmatpush1.msra.mxu0 %v275
    %946 = vmatprep.subr.mxu0 0.0
    %947 = vmatpush1.msra.mxu0 %v276
    %948 = vmatprep.subr.mxu0 0.0
    %949 = vmatpush1.msra.mxu0 %v277
    %950 = vmatprep.subr.mxu0 0.0
    %951 = vmatpush1.msra.mxu0 %v278
    %952 = vmatprep.subr.mxu0 0.0
    %953 = vmatpush1.msra.mxu0 %v279
    %954 = vmatprep.subr.mxu0 0.0
    %955 = vmatpush1.msra.mxu0 %v280
    %956 = vmatprep.subr.mxu0 0.0
    %957 = vmatpush1.msra.mxu0 %v281
    %958 = vmatprep.subr.mxu0 0.0
    %959 = vmatpush1.msra.mxu0 %v282
    %960 = vmatprep.subr.mxu0 0.0
    %961 = vmatpush1.msra.mxu0 0.0
    %962 = vmatprep.subr.mxu0 0.0
    %963 = vmatpush1.msra.mxu0 0.0
    %964 = vmatprep.subr.mxu0 0.0
    %965 = vmatpush1.msra.mxu0 0.0
    %966 = vmatprep.subr.mxu0 0.0
    %967 = vmatpush1.msra.mxu0 0.0
    %968 = vmatprep.subr.mxu0 0.0
    %969 = vmatpush1.msra.mxu0 0.0
    %970 = vmatprep.subr.mxu0 0.0
    %971 = vmatpush1.msra.mxu0 0.0
    %972 = vmatprep.subr.mxu0 0.0
    %973 = vmatpush1.msra.mxu0 0.0
    %974 = vmatprep.subr.mxu0 0.0
    %975 = vmatpush1.msra.mxu0 0.0
    %976 = vmatprep.subr.mxu0 0.0
    %977 = vmatpush1.msra.mxu0 0.0
    %978 = vmatprep.subr.mxu0 0.0
    %979 = vmatpush1.msra.mxu0 0.0
    %980 = vmatprep.subr.mxu0 0.0
    %981 = vmatpush1.msra.mxu0 0.0
    %982 = vmatprep.subr.mxu0 0.0
    %983 = vmatpush1.msra.mxu0 0.0
    %984 = vmatprep.subr.mxu0 0.0
    %985 = vmatpush1.msra.mxu0 0.0
    %986 = vmatprep.subr.mxu0 0.0
    %987 = vmatpush1.msra.mxu0 0.0
    %988 = vmatprep.subr.mxu0 0.0
    %989 = vmatpush1.msra.mxu0 0.0
    %990 = vmatprep.subr.mxu0 0.0
    %991 = vmatpush1.msra.mxu0 0.0
    %992 = vmatprep.mubr.f32.mxu0 0.0
    %993 = vmatmul.mubr.f32.gmra.mrb[0].mxu0 %v926
    %v994 = vpop.f32.mrb[0].mxu0
    %v995 = vadd.f32 0.0, %v994
    %v996 = vpop.f32.mrb[0].mxu0
    %997 = vmatprep.mubr.f32.mxu0 0.0
    %998 = vmatmul.mubr.f32.gmra.mrb[0].mxu0 %v927
    %v999 = vpop.f32.mrb[0].mxu0
    %v1000 = vadd.f32 0.0, %v999
    %v1001 = vpop.f32.mrb[0].mxu0
    %1002 = vdwg.mxu0
    %v1003 = vsel %vm368, %v995, -inf
    %v1004 = vrot.slane %v1003, 4
    %v1005 = vmax.f32 %v1003, %v1004
    %v1006 = vrot.slane %v1005, 2
    %v1007 = vmax.f32 %v1005, %v1006
    %v1008 = vrot.slane %v1007, 1
    %v1009 = vmax.f32 %v1007, %v1008
    %v1010 = vsel %vm368, %v1000, -inf
    %v1011 = vrot.slane %v1010, 4
    %v1012 = vmax.f32 %v1010, %v1011
    %v1013 = vrot.slane %v1012, 2
    %v1014 = vmax.f32 %v1012, %v1013
    %v1015 = vrot.slane %v1014, 1
    %v1016 = vmax.f32 %v1014, %v1015
    %v1017 = vsub.f32 %v995, %v1009
    %v1018 = vsub.f32 %v1000, %v1016
    %v1019 = vmul.f32 %v1017, 1.442695
    %v1020 = vpow.pop %v1019
    %v1021 = vmul.f32 %v1018, 1.442695
    %v1022 = vpow.pop %v1021
    %v1023 = vsel %vm368, %v1020, 0.0
    %v1024 = vrot.slane %v1023, 4
    %v1025 = vadd.f32 %v1023, %v1024
    %v1026 = vrot.slane %v1025, 2
    %v1027 = vadd.f32 %v1025, %v1026
    %v1028 = vrot.slane %v1027, 1
    %v1029 = vadd.f32 %v1027, %v1028
    %v1030 = vsel %vm368, %v1022, 0.0
    %v1031 = vrot.slane %v1030, 4
    %v1032 = vadd.f32 %v1030, %v1031
    %v1033 = vrot.slane %v1032, 2
    %v1034 = vadd.f32 %v1032, %v1033
    %v1035 = vrot.slane %v1034, 1
    %v1036 = vadd.f32 %v1034, %v1035
    %v1037 = vrcp.pop %v1029
    %v1038 = vrcp.pop %v1036
    %v1039 = vmul.f32 %v1020, %v1037
    %v1040 = vmul.f32 %v1022, %v1038
    %v1042 = vsel %vm368, %v1039, 0
    %v1045 = vsel %vm368, %v1040, 0
    %1047 = vmatprep.subr.mxu0 0.0
    %1048 = vmatpush1.msra.mxu0 %v415
    %1049 = vmatprep.subr.mxu0 0.0
    %1050 = vmatpush1.msra.mxu0 0.0
    %1051 = vmatprep.subr.mxu0 0.0
    %1052 = vmatpush1.msra.mxu0 0.0
    %1053 = vmatprep.subr.mxu0 0.0
    %1054 = vmatpush1.msra.mxu0 0.0
    %1055 = vmatprep.subr.mxu0 0.0
    %1056 = vmatpush1.msra.mxu0 0.0
    %1057 = vmatprep.subr.mxu0 0.0
    %1058 = vmatpush1.msra.mxu0 0.0
    %1059 = vmatprep.subr.mxu0 0.0
    %1060 = vmatpush1.msra.mxu0 0.0
    %1061 = vmatprep.subr.mxu0 0.0
    %1062 = vmatpush1.msra.mxu0 0.0
    %1063 = vmatprep.subr.mxu0 0.0
    %1064 = vmatpush1.msra.mxu0 0.0
    %1065 = vmatprep.subr.mxu0 0.0
    %1066 = vmatpush1.msra.mxu0 0.0
    %1067 = vmatprep.subr.mxu0 0.0
    %1068 = vmatpush1.msra.mxu0 0.0
    %1069 = vmatprep.subr.mxu0 0.0
    %1070 = vmatpush1.msra.mxu0 0.0
    %1071 = vmatprep.subr.mxu0 0.0
    %1072 = vmatpush1.msra.mxu0 0.0
    %1073 = vmatprep.subr.mxu0 0.0
    %1074 = vmatpush1.msra.mxu0 0.0
    %1075 = vmatprep.subr.mxu0 0.0
    %1076 = vmatpush1.msra.mxu0 0.0
    %1077 = vmatprep.subr.mxu0 0.0
    %1078 = vmatpush1.msra.mxu0 0.0
    %1079 = vmatprep.subr.mxu0 0.0
    %1080 = vmatpush1.msra.mxu0 0.0
    %1081 = vmatprep.subr.mxu0 0.0
    %1082 = vmatpush1.msra.mxu0 0.0
    %1083 = vmatprep.subr.mxu0 0.0
    %1084 = vmatpush1.msra.mxu0 0.0
    %1085 = vmatprep.subr.mxu0 0.0
    %1086 = vmatpush1.msra.mxu0 0.0
    %1087 = vmatprep.subr.mxu0 0.0
    %1088 = vmatpush1.msra.mxu0 0.0
    %1089 = vmatprep.subr.mxu0 0.0
    %1090 = vmatpush1.msra.mxu0 0.0
    %1091 = vmatprep.subr.mxu0 0.0
    %1092 = vmatpush1.msra.mxu0 0.0
    %1093 = vmatprep.subr.mxu0 0.0
    %1094 = vmatpush1.msra.mxu0 0.0
    %1095 = vmatprep.subr.mxu0 0.0
    %1096 = vmatpush1.msra.mxu0 0.0
    %1097 = vmatprep.subr.mxu0 0.0
    %1098 = vmatpush1.msra.mxu0 0.0
    %1099 = vmatprep.subr.mxu0 0.0
    %1100 = vmatpush1.msra.mxu0 0.0
    %1101 = vmatprep.subr.mxu0 0.0
    %1102 = vmatpush1.msra.mxu0 0.0
    %1103 = vmatprep.subr.mxu0 0.0
    %1104 = vmatpush1.msra.mxu0 0.0
    %1105 = vmatprep.subr.mxu0 0.0
    %1106 = vmatpush1.msra.mxu0 0.0
    %1107 = vmatprep.subr.mxu0 0.0
    %1108 = vmatpush1.msra.mxu0 0.0
    %1109 = vmatprep.subr.mxu0 0.0
    %1110 = vmatpush1.msra.mxu0 0.0
    %1111 = vmatprep.mubr.f32.mxu0 0.0
    %1112 = vmatmul.mubr.f32.gmra.mrb[0].mxu0 %v1042
    %v1113 = vpop.f32.mrb[0].mxu0
    %v1114 = vadd.f32 0.0, %v1113
    %v1115 = vpop.f32.mrb[0].mxu0
    %1116 = vmatprep.mubr.f32.mxu0 0.0
    %1117 = vmatmul.mubr.f32.gmra.mrb[0].mxu0 %v1045
    %v1118 = vpop.f32.mrb[0].mxu0
    %v1119 = vadd.f32 0.0, %v1118
    %v1120 = vpop.f32.mrb[0].mxu0
    %1121 = vdwg.mxu0
    %v1122 = vmul.f32 %v1114, %v259
    %v1123 = vmul.f32 %v1119, %v265
    %v1124 = vrot.slane %v1122, 4
    %v1125 = vadd.f32 %v1122, %v1124
    %v1126 = vrot.slane %v1125, 2
    %v1127 = vadd.f32 %v1125, %v1126
    %v1128 = vrot.slane %v1127, 1
    %v1129 = vadd.f32 %v1127, %v1128
    %v1130 = vrot.slane %v1123, 4
    %v1131 = vadd.f32 %v1123, %v1130
    %v1132 = vrot.slane %v1131, 2
    %v1133 = vadd.f32 %v1131, %v1132
    %v1134 = vrot.slane %v1133, 1
    %v1135 = vadd.f32 %v1133, %v1134
    %v1136 = vld [vmem:[%s6] sm:$0xff]
    %v1137 = vld [vmem:[%s6 + $0x8] sm:$0xff]
    %v1138 = vld [vmem:[%s6 + $0x10] sm:$0xff]
    %v1139 = vld [vmem:[%s6 + $0x18] sm:$0xff]
    %v1140 = vld [vmem:[%s6 + $0x20] sm:$0xff]
    %v1141 = vld [vmem:[%s6 + $0x28] sm:$0xff]
    %v1142 = vld [vmem:[%s6 + $0x30] sm:$0xff]
    %v1143 = vld [vmem:[%s6 + $0x38] sm:$0xff]
    %v1144 = vld [vmem:[%s6 + $0x40] sm:$0xff]
    %v1145 = vld [vmem:[%s6 + $0x48] sm:$0xff]
    %v1146 = vld [vmem:[%s6 + $0x50] sm:$0xff]
    %v1147 = vld [vmem:[%s6 + $0x58] sm:$0xff]
    %v1148 = vld [vmem:[%s6 + $0x60] sm:$0xff]
    %v1149 = vld [vmem:[%s6 + $0x68] sm:$0xff]
    %v1150 = vld [vmem:[%s6 + $0x70] sm:$0xff]
    %v1151 = vld [vmem:[%s6 + $0x78] sm:$0xff]
    %v1152 = vld [vmem:[%s7] sm:$0x1]
    %v1154 = vlaneseq
    %v1155 = vshrl.u32 %v1154, 7
    %v1156 = vsub.s32 0, %v1155
    %v1157 = vrot.slane %v1152, %v1156
    %vm1161 = vcmask 1041409
    %v1162 = vsel %vm1161, %v1135, %v1129
    %1164 = vmatprep.subr.mxu0 0.0
    %1165 = vmatpush1.msra.mxu0 %v1136
    %1166 = vmatprep.subr.mxu0 0.0
    %1167 = vmatpush1.msra.mxu0 %v1137
    %1168 = vmatprep.subr.mxu0 0.0
    %1169 = vmatpush1.msra.mxu0 %v1138
    %1170 = vmatprep.subr.mxu0 0.0
    %1171 = vmatpush1.msra.mxu0 %v1139
    %1172 = vmatprep.subr.mxu0 0.0
    %1173 = vmatpush1.msra.mxu0 %v1140
    %1174 = vmatprep.subr.mxu0 0.0
    %1175 = vmatpush1.msra.mxu0 %v1141
    %1176 = vmatprep.subr.mxu0 0.0
    %1177 = vmatpush1.msra.mxu0 %v1142
    %1178 = vmatprep.subr.mxu0 0.0
    %1179 = vmatpush1.msra.mxu0 %v1143
    %1180 = vmatprep.subr.mxu0 0.0
    %1181 = vmatpush1.msra.mxu0 %v1144
    %1182 = vmatprep.subr.mxu0 0.0
    %1183 = vmatpush1.msra.mxu0 %v1145
    %1184 = vmatprep.subr.mxu0 0.0
    %1185 = vmatpush1.msra.mxu0 %v1146
    %1186 = vmatprep.subr.mxu0 0.0
    %1187 = vmatpush1.msra.mxu0 %v1147
    %1188 = vmatprep.subr.mxu0 0.0
    %1189 = vmatpush1.msra.mxu0 %v1148
    %1190 = vmatprep.subr.mxu0 0.0
    %1191 = vmatpush1.msra.mxu0 %v1149
    %1192 = vmatprep.subr.mxu0 0.0
    %1193 = vmatpush1.msra.mxu0 %v1150
    %1194 = vmatprep.subr.mxu0 0.0
    %1195 = vmatpush1.msra.mxu0 %v1151
    %1196 = vmatprep.subr.mxu0 0.0
    %1197 = vmatpush1.msra.mxu0 0.0
    %1198 = vmatprep.subr.mxu0 0.0
    %1199 = vmatpush1.msra.mxu0 0.0
    %1200 = vmatprep.subr.mxu0 0.0
    %1201 = vmatpush1.msra.mxu0 0.0
    %1202 = vmatprep.subr.mxu0 0.0
    %1203 = vmatpush1.msra.mxu0 0.0
    %1204 = vmatprep.subr.mxu0 0.0
    %1205 = vmatpush1.msra.mxu0 0.0
    %1206 = vmatprep.subr.mxu0 0.0
    %1207 = vmatpush1.msra.mxu0 0.0
    %1208 = vmatprep.subr.mxu0 0.0
    %1209 = vmatpush1.msra.mxu0 0.0
    %1210 = vmatprep.subr.mxu0 0.0
    %1211 = vmatpush1.msra.mxu0 0.0
    %1212 = vmatprep.subr.mxu0 0.0
    %1213 = vmatpush1.msra.mxu0 0.0
    %1214 = vmatprep.subr.mxu0 0.0
    %1215 = vmatpush1.msra.mxu0 0.0
    %1216 = vmatprep.subr.mxu0 0.0
    %1217 = vmatpush1.msra.mxu0 0.0
    %1218 = vmatprep.subr.mxu0 0.0
    %1219 = vmatpush1.msra.mxu0 0.0
    %1220 = vmatprep.subr.mxu0 0.0
    %1221 = vmatpush1.msra.mxu0 0.0
    %1222 = vmatprep.subr.mxu0 0.0
    %1223 = vmatpush1.msra.mxu0 0.0
    %1224 = vmatprep.subr.mxu0 0.0
    %1225 = vmatpush1.msra.mxu0 0.0
    %1226 = vmatprep.subr.mxu0 0.0
    %1227 = vmatpush1.msra.mxu0 0.0
    %1228 = vmatprep.mubr.f32.mxu0 0.0
    %1229 = vmatmul.mubr.f32.gmra.mrb[0].mxu0 %v1162
    %v1230 = vpop.f32.mrb[0].mxu0
    %v1231 = vadd.f32 %v1157, %v1230
    %v1232 = vpop.f32.mrb[0].mxu0
    %1233 = vdwg.mxu0
    %v1234 = vmax.f32 %v1231, 0.0
    %v1235 = vld [vmem:[#allocation7] sm:$0xff]
    %v1236 = vld [vmem:[#allocation7 + $0x8] sm:$0xff]
    %v1237 = vld [vmem:[#allocation7 + $0x10] sm:$0xff]
    %v1238 = vld [vmem:[#allocation7 + $0x18] sm:$0xff]
    %v1239 = vld [vmem:[#allocation7 + $0x20] sm:$0xff]
    %v1240 = vld [vmem:[#allocation7 + $0x28] sm:$0xff]
    %v1241 = vld [vmem:[#allocation7 + $0x30] sm:$0xff]
    %v1242 = vld [vmem:[#allocation7 + $0x38] sm:$0xff]
    %v1243 = vld [vmem:[#allocation7 + $0x40] sm:$0xff]
    %v1244 = vld [vmem:[#allocation7 + $0x48] sm:$0xff]
    %v1245 = vld [vmem:[#allocation7 + $0x50] sm:$0xff]
    %v1246 = vld [vmem:[#allocation7 + $0x58] sm:$0xff]
    %v1247 = vld [vmem:[#allocation7 + $0x60] sm:$0xff]
    %v1248 = vld [vmem:[#allocation7 + $0x68] sm:$0xff]
    %v1249 = vld [vmem:[#allocation7 + $0x70] sm:$0xff]
    %v1250 = vld [vmem:[#allocation7 + $0x78] sm:$0xff]
    %v1251 = vld [vmem:[#allocation7 + $0x80] sm:$0xff]
    %v1252 = vld [vmem:[#allocation7 + $0x88] sm:$0xff]
    %v1253 = vld [vmem:[#allocation7 + $0x90] sm:$0xff]
    %v1254 = vld [vmem:[#allocation7 + $0x98] sm:$0xff]
    %v1255 = vld [vmem:[#allocation7 + $0xa0] sm:$0xff]
    %v1256 = vld [vmem:[#allocation7 + $0xa8] sm:$0xff]
    %v1257 = vld [vmem:[#allocation7 + $0xb0] sm:$0xff]
    %v1258 = vld [vmem:[#allocation7 + $0xb8] sm:$0xff]
    %v1259 = vld [vmem:[#allocation7 + $0xc0] sm:$0xff]
    %v1260 = vld [vmem:[#allocation7 + $0xc8] sm:$0xff]
    %v1261 = vld [vmem:[#allocation7 + $0xd0] sm:$0xff]
    %v1262 = vld [vmem:[#allocation7 + $0xd8] sm:$0xff]
    %v1263 = vld [vmem:[#allocation7 + $0xe0] sm:$0xff]
    %v1264 = vld [vmem:[#allocation7 + $0xe8] sm:$0xff]
    %v1265 = vld [vmem:[#allocation7 + $0xf0] sm:$0xff]
    %v1266 = vld [vmem:[#allocation7 + $0xf8] sm:$0xff]
    %v1267 = vld [vmem:[%s9] sm:$0x3]
    %v1269 = vlaneseq
    %v1270 = vshrl.u32 %v1269, 7
    %v1271 = vsub.s32 0, %v1270
    %v1272 = vrot.slane %v1267, %v1271
    %v1273 = vlaneseq
    %v1274 = vshrl.u32 %v1273, 7
    %v1275 = vsub.s32 1, %v1274
    %v1276 = vrot.slane %v1267, %v1275
    %1279 = vmatprep.subr.mxu0 %v1236
    %1280 = vmatpush1.msra.mxu0 %v1235
    %1281 = vmatprep.subr.mxu0 %v1238
    %1282 = vmatpush1.msra.mxu0 %v1237
    %1283 = vmatprep.subr.mxu0 %v1240
    %1284 = vmatpush1.msra.mxu0 %v1239
    %1285 = vmatprep.subr.mxu0 %v1242
    %1286 = vmatpush1.msra.mxu0 %v1241
    %1287 = vmatprep.subr.mxu0 %v1244
    %1288 = vmatpush1.msra.mxu0 %v1243
    %1289 = vmatprep.subr.mxu0 %v1246
    %1290 = vmatpush1.msra.mxu0 %v1245
    %1291 = vmatprep.subr.mxu0 %v1248
    %1292 = vmatpush1.msra.mxu0 %v1247
    %1293 = vmatprep.subr.mxu0 %v1250
    %1294 = vmatpush1.msra.mxu0 %v1249
    %1295 = vmatprep.subr.mxu0 %v1252
    %1296 = vmatpush1.msra.mxu0 %v1251
    %1297 = vmatprep.subr.mxu0 %v1254
    %1298 = vmatpush1.msra.mxu0 %v1253
    %1299 = vmatprep.subr.mxu0 %v1256
    %1300 = vmatpush1.msra.mxu0 %v1255
    %1301 = vmatprep.subr.mxu0 %v1258
    %1302 = vmatpush1.msra.mxu0 %v1257
    %1303 = vmatprep.subr.mxu0 %v1260
    %1304 = vmatpush1.msra.mxu0 %v1259
    %1305 = vmatprep.subr.mxu0 %v1262
    %1306 = vmatpush1.msra.mxu0 %v1261
    %1307 = vmatprep.subr.mxu0 %v1264
    %1308 = vmatpush1.msra.mxu0 %v1263
    %1309 = vmatprep.subr.mxu0 %v1266
    %1310 = vmatpush1.msra.mxu0 %v1265
    %1311 = vmatprep.subr.mxu0 0.0
    %1312 = vmatpush1.msra.mxu0 0.0
    %1313 = vmatprep.subr.mxu0 0.0
    %1314 = vmatpush1.msra.mxu0 0.0
    %1315 = vmatprep.subr.mxu0 0.0
    %1316 = vmatpush1.msra.mxu0 0.0
    %1317 = vmatprep.subr.mxu0 0.0
    %1318 = vmatpush1.msra.mxu0 0.0
    %1319 = vmatprep.subr.mxu0 0.0
    %1320 = vmatpush1.msra.mxu0 0.0
    %1321 = vmatprep.subr.mxu0 0.0
    %1322 = vmatpush1.msra.mxu0 0.0
    %1323 = vmatprep.subr.mxu0 0.0
    %1324 = vmatpush1.msra.mxu0 0.0
    %1325 = vmatprep.subr.mxu0 0.0
    %1326 = vmatpush1.msra.mxu0 0.0
    %1327 = vmatprep.subr.mxu0 0.0
    %1328 = vmatpush1.msra.mxu0 0.0
    %1329 = vmatprep.subr.mxu0 0.0
    %1330 = vmatpush1.msra.mxu0 0.0
    %1331 = vmatprep.subr.mxu0 0.0
    %1332 = vmatpush1.msra.mxu0 0.0
    %1333 = vmatprep.subr.mxu0 0.0
    %1334 = vmatpush1.msra.mxu0 0.0
    %1335 = vmatprep.subr.mxu0 0.0
    %1336 = vmatpush1.msra.mxu0 0.0
    %1337 = vmatprep.subr.mxu0 0.0
    %1338 = vmatpush1.msra.mxu0 0.0
    %1339 = vmatprep.subr.mxu0 0.0
    %1340 = vmatpush1.msra.mxu0 0.0
    %1341 = vmatprep.subr.mxu0 0.0
    %1342 = vmatpush1.msra.mxu0 0.0
    %1343 = vmatprep.mubr.f32.mxu0 0.0
    %1344 = vmatmul.mubr.f32.gmra.mrb[0].mxu0 %v1234
    %v1345 = vpop.f32.mrb[0].mxu0
    %v1346 = vadd.f32 %v1272, %v1345
    %v1347 = vpop.f32.mrb[0].mxu0
    %v1348 = vadd.f32 %v1276, %v1347
    %1349 = vdwg.mxu0
    %v1352 = vcombine.low %v1346, %v1348
    %v1354 = vunpack.c.l.s4 1983009808
    %v1355 = vunpack.c.0.s8 %v1354
    %v1356 = vlaneseq
    %v1357 = vshrl.u32 %v1356, 7
    %v1358 = vsub.s32 %v1355, %v1357
    %v1359 = vrot.slane %v1352, %v1358
    %1361 = vst [vmem:[#allocation8] sm:$0xf] %v1359
    // Predicated region
    $region54: #{tpu_custom_call.1} parent=1 // pred_check
      _
    $region55: #{tpu_custom_call.1} parent=1 // pred_check_branch
      %1363 = sbr.rel (0) target = $region57
    $region56: #{tpu_custom_call.1} parent=1 // pred_region
      %s1365 = ssub.s32 64, 64
      %1366 = vsyncadd [#allocation4], %s1365
      %s1368 = sshll.u32 [#allocation8], 4
      %s1369 = int_to_ptr.vmem [resolvable:$true] %s1368
      %1371 = dma.vmem_to_hbm [thread:$0]  %s1369, 64, %s10, [#allocation4]
    $region57: #{tpu_custom_call.1} parent=1 // pred_fallthru
      _
    // Predicated region
    $region58: #{tpu_custom_call.1} parent=1 // pred_check
      _
    $region59: #{tpu_custom_call.1} parent=1 // pred_check_branch
      %1373 = sbr.rel (0) target = $region61
    $region60: #{tpu_custom_call.1} parent=1 // pred_region
      %1374 = dma.done [#allocation4], 64
    $region61: #{tpu_custom_call.1} parent=1 // pred_fallthru
      _
    %1375 = vsyncpa [#allocation3], 1
    %1376 = vsyncpa [#allocation6], 1
    %1377 = vsyncpa [#allocation4], 1

</llo_original>
